<compile_context>
chip_gen: v5e
topology: v5e:2x2
jax: 0.10.0
libtpu: 0.0.40
codegen_flags: <defaults>
</compile_context>

<pallas_src>
import jax
import jax.numpy as jnp
from jax.experimental import pallas as pl
from jax.experimental.pallas import tpu as pltpu

NCLASS_PAD = 128  # pad class dim to one full lane group -> unmasked stores


def _round_up(a: int, b: int) -> int:
    return (a + b - 1) // b * b


def combined_model_kernel(x_ref, w0_ref, b0_ref, w1_ref, b1_ref, out_ref):
    # --- backbone (GAP already folded into w0 in the wrapper): single MXU matmul, K = C*H*W ---
    feats = jnp.dot(x_ref[...], w0_ref[...],
                    preferred_element_type=jnp.float32) + b0_ref[...]        # (Bt, 512) f32

    # --- new_layer: Linear(512, 3), padded to 128 output lanes (padded bias = -1e30) ---
    logits = jnp.dot(feats.astype(w1_ref.dtype), w1_ref[...],
                     preferred_element_type=jnp.float32) + b1_ref[...]       # (Bt, 128) f32

    # --- softmax over the class dim (numerically stable; padded lanes -> exp(-huge) = 0) ---
    m = jnp.max(logits, axis=-1, keepdims=True)
    e = jnp.exp(logits - m)
    denom = jnp.sum(e, axis=-1, keepdims=True)                               # (Bt, 1)
    inv = pl.reciprocal(denom, approx=True)          # EUP slot
    inv = inv * (2.0 - denom * inv)                  # one Newton step -> f32 accuracy
    out_ref[...] = e * inv


def combined_model(x, w0, b0, w1, b1, *, block_b=128, compute_dtype=jnp.float32):
    """x: (B, C, H, W) NCHW.  w0: (C, 512), b0: (1, 512), w1: (512, NC), b1: (1, NC)."""
    B, C, H, W = x.shape
    K = C * H * W
    EMB = w0.shape[1]
    NC = w1.shape[1]
    assert NC <= NCLASS_PAD

    # ---- wrapper-side layout / algebraic prep (one-time, plain XLA) ----
    # Lane-dense activations: (B, C*H*W); fold the global average pool into w0.
    x_flat = x.reshape(B, K)
    w0_full = jnp.repeat(w0.astype(jnp.float32) / float(H * W), H * W, axis=0)   # (K, 512)

    # Pad class dim to 128; padded logits get a huge negative bias so softmax ignores them.
    w1_pad = jnp.zeros((EMB, NCLASS_PAD), jnp.float32).at[:, :NC].set(w1.astype(jnp.float32))
    b1_pad = jnp.full((1, NCLASS_PAD), -1e30, jnp.float32).at[:, :NC].set(b1.astype(jnp.float32))

    # MXU feed dtype (bf16 on v6e/v7x for full MXU rate); biases / accumulation stay f32.
    x_flat = x_flat.astype(compute_dtype)
    w0_full = w0_full.astype(compute_dtype)
    w1_pad = w1_pad.astype(compute_dtype)
    b0_f32 = b0.astype(jnp.float32)

    # ---- batch grid: double-buffered input tiles, resident weights ----
    # Tile sized well under the 16/32 MiB default scoped VMEM on all generations
    # (128x1024 f32 tile ~0.5 MiB x2 buffers + 2 MiB weights + 64 KiB output).
    bt = _round_up(min(block_b, _round_up(B, 8)), 8)
    B_pad = _round_up(B, bt)
    if B_pad != B:
        x_flat = jnp.pad(x_flat, ((0, B_pad - B), (0, 0)))
    nb = B_pad // bt

    out = pl.pallas_call(
        combined_model_kernel,
        out_shape=jax.ShapeDtypeStruct((B_pad, NCLASS_PAD), jnp.float32),
        grid=(nb,),
        in_specs=[
            pl.BlockSpec((bt, K), lambda i: (i, 0)),            # activations: tiled over batch
            pl.BlockSpec((K, EMB), lambda i: (0, 0)),           # w0 (GAP-folded): resident
            pl.BlockSpec((1, EMB), lambda i: (0, 0)),           # b0: resident
            pl.BlockSpec((EMB, NCLASS_PAD), lambda i: (0, 0)),  # w1 (class-padded): resident
            pl.BlockSpec((1, NCLASS_PAD), lambda i: (0, 0)),    # b1 (class-padded): resident
        ],
        out_specs=pl.BlockSpec((bt, NCLASS_PAD), lambda i: (i, 0)),
        compiler_params=pltpu.CompilerParams(
            dimension_semantics=("parallel",),  # v7x: 2 TCs split the batch; no-op on v5e/v6e
        ),
    )(x_flat, w0_full, b0_f32, w1_pad, b1_pad)

    return out[:B, :NC]


def reference(x, w0, b0, w1, b1):
    pooled = jnp.mean(x.astype(jnp.float32), axis=(2, 3))
    feats = pooled @ w0 + b0
    logits = feats @ w1 + b1
    return jax.nn.softmax(logits, axis=1)


if __name__ == "__main__":
    key = jax.random.PRNGKey(0)
    k_x, k_w0, k_b0, k_w1, k_b1 = jax.random.split(key, 5)

    # Small shapes consistent with the forward pass.
    B, C, H, W = 2, 4, 16, 16
    EMB, NCLASS = 512, 3

    x = jax.random.normal(k_x, (B, C, H, W), dtype=jnp.float32)

    # Deterministic parameter init (synthetic, not loaded from a checkpoint).
    w0 = jax.random.normal(k_w0, (C, EMB), dtype=jnp.float32) * (1.0 / jnp.sqrt(C))
    b0 = jax.random.normal(k_b0, (1, EMB), dtype=jnp.float32) * 0.01
    w1 = jax.random.normal(k_w1, (EMB, NCLASS), dtype=jnp.float32) * (1.0 / jnp.sqrt(EMB))
    b1 = jax.random.normal(k_b1, (1, NCLASS), dtype=jnp.float32) * 0.01

    ref = reference(x, w0, b0, w1, b1)

    # f32 compute path: tight check against the pure-JAX reference.
    probs = combined_model(x, w0, b0, w1, b1, compute_dtype=jnp.float32)
    probs = jax.block_until_ready(probs)
    assert probs.shape == (B, NCLASS)
    assert jnp.allclose(jnp.sum(probs, axis=1), 1.0, atol=1e-4)
    assert jnp.allclose(probs, ref, atol=1e-4, rtol=1e-4)

    # bf16 MXU-feed path (v6e/v7x recommendation): loose check, accumulation is f32.
    probs_bf16 = combined_model(x, w0, b0, w1, b1, compute_dtype=jnp.bfloat16)
    probs_bf16 = jax.block_until_ready(probs_bf16)
    assert probs_bf16.shape == (B, NCLASS)
    assert jnp.allclose(probs_bf16, ref, atol=3e-2)

    print("KERNEL_OK")
</pallas_src>

<mosaic_0001>
module attributes {stable_mosaic.version = 11 : i64} {
  func.func @combined_model_kernel(%arg0: i32, %arg1: memref<8x1024xf32, #tpu.memory_space<vmem>>, %arg2: memref<1024x512xf32, #tpu.memory_space<vmem>>, %arg3: memref<1x512xf32, #tpu.memory_space<vmem>>, %arg4: memref<512x128xf32, #tpu.memory_space<vmem>>, %arg5: memref<1x128xf32, #tpu.memory_space<vmem>>, %arg6: memref<8x128xf32, #tpu.memory_space<vmem>>) attributes {dimension_semantics = [#tpu.dimension_semantics<parallel>], iteration_bounds = array<i64: 1>, scalar_prefetch = 0 : i64, scratch_operands = 0 : i64, tpu.core_type = #tpu.core_type<tc>, window_params = [{transform_indices = @transform_0, window_bounds = array<i64: 8, 1024>}, {pipeline_mode = #tpu.pipeline_mode<synchronous>, transform_indices = @transform_1, window_bounds = array<i64: 1024, 512>}, {pipeline_mode = #tpu.pipeline_mode<synchronous>, transform_indices = @transform_2, window_bounds = array<i64: 1, 512>}, {pipeline_mode = #tpu.pipeline_mode<synchronous>, transform_indices = @transform_3, window_bounds = array<i64: 512, 128>}, {pipeline_mode = #tpu.pipeline_mode<synchronous>, transform_indices = @transform_4, window_bounds = array<i64: 1, 128>}, {transform_indices = @transform_5, window_bounds = array<i64: 8, 128>}]} {
    %c0 = arith.constant 0 : index
    %c0_0 = arith.constant 0 : index
    %0 = vector.load %arg1[%c0, %c0_0] : memref<8x1024xf32, #tpu.memory_space<vmem>>, vector<8x1024xf32>
    %c0_1 = arith.constant 0 : index
    %c0_2 = arith.constant 0 : index
    %1 = vector.load %arg2[%c0_1, %c0_2] : memref<1024x512xf32, #tpu.memory_space<vmem>>, vector<1024x512xf32>
    %cst = arith.constant dense<0.000000e+00> : vector<8x512xf32>
    %2 = tpu.matmul %0, %1, %cst {dimension_numbers = #tpu.dot_dimension_numbers<[1], [0], [0], [1], [0, 0, 1, 1], [], []>} : vector<8x1024xf32>, vector<1024x512xf32>, vector<8x512xf32> -> vector<8x512xf32>
    %c0_3 = arith.constant 0 : index
    %c0_4 = arith.constant 0 : index
    %3 = vector.load %arg3[%c0_3, %c0_4] : memref<1x512xf32, #tpu.memory_space<vmem>>, vector<1x512xf32>
    %4 = vector.broadcast %3 : vector<1x512xf32> to vector<8x512xf32>
    %5 = arith.addf %2, %4 : vector<8x512xf32>
    %c0_5 = arith.constant 0 : index
    %c0_6 = arith.constant 0 : index
    %6 = vector.load %arg4[%c0_5, %c0_6] : memref<512x128xf32, #tpu.memory_space<vmem>>, vector<512x128xf32>
    %cst_7 = arith.constant dense<0.000000e+00> : vector<8x128xf32>
    %7 = tpu.matmul %5, %6, %cst_7 {dimension_numbers = #tpu.dot_dimension_numbers<[1], [0], [0], [1], [0, 0, 1, 1], [], []>} : vector<8x512xf32>, vector<512x128xf32>, vector<8x128xf32> -> vector<8x128xf32>
    %c0_8 = arith.constant 0 : index
    %c0_9 = arith.constant 0 : index
    %8 = vector.load %arg5[%c0_8, %c0_9] : memref<1x128xf32, #tpu.memory_space<vmem>>, vector<1x128xf32>
    %9 = vector.broadcast %8 : vector<1x128xf32> to vector<8x128xf32>
    %10 = arith.addf %7, %9 : vector<8x128xf32>
    %cst_10 = arith.constant dense<0xFF800000> : vector<8xf32>
    %11 = vector.multi_reduction <maximumf>, %10, %cst_10 [1] : vector<8x128xf32> to vector<8xf32>
    %12 = vector.shape_cast %11 : vector<8xf32> to vector<8x1xf32>
    %13 = vector.broadcast %12 : vector<8x1xf32> to vector<8x128xf32>
    %14 = arith.subf %10, %13 : vector<8x128xf32>
    %15 = math.exp %14 : vector<8x128xf32>
    %cst_11 = arith.constant dense<0.000000e+00> : vector<8xf32>
    %16 = vector.multi_reduction <add>, %15, %cst_11 [1] : vector<8x128xf32> to vector<8xf32>
    %17 = vector.shape_cast %16 : vector<8xf32> to vector<8x1xf32>
    %18 = tpu.reciprocal %17 {approx = true} : vector<8x1xf32> -> vector<8x1xf32>
    %19 = arith.mulf %17, %18 : vector<8x1xf32>
    %cst_12 = arith.constant 2.000000e+00 : f32
    %20 = vector.broadcast %cst_12 : f32 to vector<8x1xf32>
    %21 = arith.subf %20, %19 : vector<8x1xf32>
    %22 = arith.mulf %18, %21 : vector<8x1xf32>
    %23 = vector.broadcast %22 : vector<8x1xf32> to vector<8x128xf32>
    %24 = arith.mulf %15, %23 : vector<8x128xf32>
    %c0_13 = arith.constant 0 : index
    %c0_14 = arith.constant 0 : index
    %25 = vector.load %arg6[%c0_13, %c0_14] : memref<8x128xf32, #tpu.memory_space<vmem>>, vector<8x128xf32>
    tpu.vector_store %arg6[%c0_13, %c0_14], %24 {strides = array<i32>} : memref<8x128xf32, #tpu.memory_space<vmem>>, vector<8x128xf32>,
    return
  }
  func.func @transform_0(%arg0: i32) -> (i32, i32) {
    %c0_i32 = arith.constant 0 : i32
    %c0_i32_0 = arith.constant 0 : i32
    return %arg0, %c0_i32 : i32, i32
  }
  func.func @transform_1(%arg0: i32) -> (i32, i32) {
    %c0_i32 = arith.constant 0 : i32
    %c0_i32_0 = arith.constant 0 : i32
    %c0_i32_1 = arith.constant 0 : i32
    return %c0_i32, %c0_i32_0 : i32, i32
  }
  func.func @transform_2(%arg0: i32) -> (i32, i32) {
    %c0_i32 = arith.constant 0 : i32
    %c0_i32_0 = arith.constant 0 : i32
    %c0_i32_1 = arith.constant 0 : i32
    return %c0_i32, %c0_i32_0 : i32, i32
  }
  func.func @transform_3(%arg0: i32) -> (i32, i32) {
    %c0_i32 = arith.constant 0 : i32
    %c0_i32_0 = arith.constant 0 : i32
    %c0_i32_1 = arith.constant 0 : i32
    return %c0_i32, %c0_i32_0 : i32, i32
  }
  func.func @transform_4(%arg0: i32) -> (i32, i32) {
    %c0_i32 = arith.constant 0 : i32
    %c0_i32_0 = arith.constant 0 : i32
    %c0_i32_1 = arith.constant 0 : i32
    return %c0_i32, %c0_i32_0 : i32, i32
  }
  func.func @transform_5(%arg0: i32) -> (i32, i32) {
    %c0_i32 = arith.constant 0 : i32
    %c0_i32_0 = arith.constant 0 : i32
    return %arg0, %c0_i32 : i32, i32
  }
}

</mosaic_0001>

<llo_original>
// kernel: tpu_custom_call.1
$region0: #{tpu_custom_call.1}
  #allocation0 [shape = 'u32[]', space=smem, size = 0x4, offset = 0x4, fixed_abs, tag = 'smem constant byte address 0x4 - core index']
  #allocation1 [shape = 'u32[72,128]{1,0:T(1,128)}', space=vmem, size = 0x9000, scoped, tag = 'internal scratch']
  %s0 = inlined_call_operand.hbm [shape: f32[8,1024], index: 0, kind: input, shape index: {}]
  %s1 = inlined_call_operand.hbm [shape: f32[1024,512], index: 1, kind: input, shape index: {}]
  %s2 = inlined_call_operand.hbm [shape: f32[1,512], index: 2, kind: input, shape index: {}]
  %s3 = inlined_call_operand.hbm [shape: f32[512,128], index: 3, kind: input, shape index: {}]
  %s4 = inlined_call_operand.hbm [shape: f32[1,128], index: 4, kind: input, shape index: {}]
  %s5 = inlined_call_operand.hbm [shape: f32[8,128], index: 5, kind: output, shape index: {}]
  %s6 = sld [smem:[#allocation0]]
  $region50: #{tpu_custom_call.1} parent=0
    _
  %s8 = ssub.s32 1, %s6
  %s9 = scalar_select 0, %s8, %s6
  $region1: #{tpu_custom_call.1} parent=0
    #allocation2 [shape = 'u8[32768]{0}', space=vmem, size = 0x8000, scoped, tag = 'input window, operand 0, single buffered']
    #allocation3 [shape = 's32[1]{0}', space=sflag, size = 0x4, scoped, tag = 'scoped memory for tpu_custom_call.1']
    #allocation4 [shape = 's32[1]{0}', space=sflag, size = 0x4, scoped, tag = 'scoped memory for tpu_custom_call.1']
    #allocation5 [shape = 'u8[2097152]{0}', space=vmem, size = 0x200000, scoped, tag = 'input window, operand 1, single buffered']
    #allocation6 [shape = 's32[1]{0}', space=sflag, size = 0x4, scoped, tag = 'scoped memory for tpu_custom_call.1']
    #allocation7 [shape = 'u8[2048]{0}', space=vmem, size = 0x800, scoped, tag = 'input window, operand 2, single buffered']
    #allocation8 [shape = 'u8[262144]{0}', space=vmem, size = 0x40000, scoped, tag = 'input window, operand 3, single buffered']
    #allocation9 [shape = 's32[1]{0}', space=sflag, size = 0x4, scoped, tag = 'scoped memory for tpu_custom_call.1']
    #allocation10 [shape = 'u8[512]{0}', space=vmem, size = 0x400, scoped, tag = 'input window, operand 4, single buffered']
    #allocation11 [shape = 'u8[4096]{0}', space=vmem, size = 0x1000, scoped, tag = 'output window, operand 0, single buffered']
    %10 = vsyncpa [#allocation3], 0
    %11 = vsyncpa [#allocation6], 0
    %12 = vsyncpa [#allocation9], 0
    %13 = vsyncpa [#allocation4], 0
    // Predicated region
    $region2: #{tpu_custom_call.1} parent=1 // pred_check
      _
    $region3: #{tpu_custom_call.1} parent=1 // pred_check_branch
      %15 = sbr.rel (0) target = $region5
    $region4: #{tpu_custom_call.1} parent=1 // pred_region
      %17 = vsyncadd [#allocation3], 0
      %s19 = sshll.u32 %s0, 4
      %s20 = int_to_ptr.hbm [resolvable:$true] %s19
      %s21 = sshll.u32 [#allocation2], 4
      %s22 = int_to_ptr.vmem [resolvable:$true] %s21
      %24 = dma.hbm_to_vmem [thread:$0]  %s20, 1024, %s22, [#allocation3]
    $region5: #{tpu_custom_call.1} parent=1 // pred_fallthru
      _
    // Predicated region
    $region6: #{tpu_custom_call.1} parent=1 // pred_check
      _
    $region7: #{tpu_custom_call.1} parent=1 // pred_check_branch
      %26 = sbr.rel (0) target = $region9
    $region8: #{tpu_custom_call.1} parent=1 // pred_region
      %28 = vsyncadd [#allocation6], 0
      %s29 = sshll.u32 %s1, 4
      %s30 = int_to_ptr.hbm [resolvable:$true] %s29
      %s31 = sshll.u32 [#allocation5], 4
      %s32 = int_to_ptr.vmem [resolvable:$true] %s31
      %37 = dma.hbm_to_vmem [thread:$0]  %s30, 65536, %s32, [#allocation6], 512, 512, 32
    $region9: #{tpu_custom_call.1} parent=1 // pred_fallthru
      _
    // Predicated region
    $region10: #{tpu_custom_call.1} parent=1 // pred_check
      _
    $region11: #{tpu_custom_call.1} parent=1 // pred_check_branch
      %39 = sbr.rel (0) target = $region13
    $region12: #{tpu_custom_call.1} parent=1 // pred_region
      %41 = vsyncadd [#allocation6], 0
      %s43 = sshll.u32 %s2, 4
      %s44 = int_to_ptr.hbm [resolvable:$true] %s43
      %s45 = sshll.u32 [#allocation7], 4
      %s46 = int_to_ptr.vmem [resolvable:$true] %s45
      %48 = dma.hbm_to_vmem [thread:$0]  %s44, 64, %s46, [#allocation6]
    $region13: #{tpu_custom_call.1} parent=1 // pred_fallthru
      _
    // Predicated region
    $region14: #{tpu_custom_call.1} parent=1 // pred_check
      _
    $region15: #{tpu_custom_call.1} parent=1 // pred_check_branch
      %50 = sbr.rel (0) target = $region17
    $region16: #{tpu_custom_call.1} parent=1 // pred_region
      %52 = vsyncadd [#allocation9], 0
      %s53 = sshll.u32 %s3, 4
      %s54 = int_to_ptr.hbm [resolvable:$true] %s53
      %s55 = sshll.u32 [#allocation8], 4
      %s56 = int_to_ptr.vmem [resolvable:$true] %s55
      %61 = dma.hbm_to_vmem [thread:$0]  %s54, 8192, %s56, [#allocation9], 128, 128, 8
    $region17: #{tpu_custom_call.1} parent=1 // pred_fallthru
      _
    // Predicated region
    $region18: #{tpu_custom_call.1} parent=1 // pred_check
      _
    $region19: #{tpu_custom_call.1} parent=1 // pred_check_branch
      %63 = sbr.rel (0) target = $region21
    $region20: #{tpu_custom_call.1} parent=1 // pred_region
      %65 = vsyncadd [#allocation9], 0
      %s67 = sshll.u32 %s4, 4
      %s68 = int_to_ptr.hbm [resolvable:$true] %s67
      %s69 = sshll.u32 [#allocation10], 4
      %s70 = int_to_ptr.vmem [resolvable:$true] %s69
      %72 = dma.hbm_to_vmem [thread:$0]  %s68, 16, %s70, [#allocation9]
    $region21: #{tpu_custom_call.1} parent=1 // pred_fallthru
      _
    // Predicated region
    $region22: #{tpu_custom_call.1} parent=1 // pred_check
      _
    $region23: #{tpu_custom_call.1} parent=1 // pred_check_branch
      %74 = sbr.rel (0) target = $region25
    $region24: #{tpu_custom_call.1} parent=1 // pred_region
      %76 = dma.done [#allocation3], 1024
    $region25: #{tpu_custom_call.1} parent=1 // pred_fallthru
      _
    // Predicated region
    $region26: #{tpu_custom_call.1} parent=1 // pred_check
      _
    $region27: #{tpu_custom_call.1} parent=1 // pred_check_branch
      %78 = sbr.rel (0) target = $region29
    $region28: #{tpu_custom_call.1} parent=1 // pred_region
      %80 = dma.done [#allocation6], 65536
    $region29: #{tpu_custom_call.1} parent=1 // pred_fallthru
      _
    // Predicated region
    $region30: #{tpu_custom_call.1} parent=1 // pred_check
      _
    $region31: #{tpu_custom_call.1} parent=1 // pred_check_branch
      %82 = sbr.rel (0) target = $region33
    $region32: #{tpu_custom_call.1} parent=1 // pred_region
      %84 = dma.done [#allocation6], 64
    $region33: #{tpu_custom_call.1} parent=1 // pred_fallthru
      _
    // Predicated region
    $region34: #{tpu_custom_call.1} parent=1 // pred_check
      _
    $region35: #{tpu_custom_call.1} parent=1 // pred_check_branch
      %86 = sbr.rel (0) target = $region37
    $region36: #{tpu_custom_call.1} parent=1 // pred_region
      %88 = dma.done [#allocation9], 8192
    $region37: #{tpu_custom_call.1} parent=1 // pred_fallthru
      _
    // Predicated region
    $region38: #{tpu_custom_call.1} parent=1 // pred_check
      _
    $region39: #{tpu_custom_call.1} parent=1 // pred_check_branch
      %90 = sbr.rel (0) target = $region41
    $region40: #{tpu_custom_call.1} parent=1 // pred_region
      %92 = dma.done [#allocation9], 16
    $region41: #{tpu_custom_call.1} parent=1 // pred_fallthru
      _
    %v93 = vld [vmem:[#allocation2] sm:$0xff]
    %v94 = vld [vmem:[#allocation2 + $0x8] sm:$0xff]
    %v95 = vld [vmem:[#allocation2 + $0x10] sm:$0xff]
    %v96 = vld [vmem:[#allocation2 + $0x18] sm:$0xff]
    %v97 = vld [vmem:[#allocation2 + $0x20] sm:$0xff]
    %v98 = vld [vmem:[#allocation2 + $0x28] sm:$0xff]
    %v99 = vld [vmem:[#allocation2 + $0x30] sm:$0xff]
    %v100 = vld [vmem:[#allocation2 + $0x38] sm:$0xff]
    %v101 = vld [vmem:[#allocation5] sm:$0xff]
    %v102 = vld [vmem:[#allocation5 + $0x8] sm:$0xff]
    %v103 = vld [vmem:[#allocation5 + $0x10] sm:$0xff]
    %v104 = vld [vmem:[#allocation5 + $0x18] sm:$0xff]
    %v105 = vld [vmem:[#allocation5 + $0x20] sm:$0xff]
    %v106 = vld [vmem:[#allocation5 + $0x28] sm:$0xff]
    %v107 = vld [vmem:[#allocation5 + $0x30] sm:$0xff]
    %v108 = vld [vmem:[#allocation5 + $0x38] sm:$0xff]
    %v109 = vld [vmem:[#allocation5 + $0x40] sm:$0xff]
    %v110 = vld [vmem:[#allocation5 + $0x48] sm:$0xff]
    %v111 = vld [vmem:[#allocation5 + $0x50] sm:$0xff]
    %v112 = vld [vmem:[#allocation5 + $0x58] sm:$0xff]
    %v113 = vld [vmem:[#allocation5 + $0x60] sm:$0xff]
    %v114 = vld [vmem:[#allocation5 + $0x68] sm:$0xff]
    %v115 = vld [vmem:[#allocation5 + $0x70] sm:$0xff]
    %v116 = vld [vmem:[#allocation5 + $0x78] sm:$0xff]
    %v117 = vld [vmem:[#allocation5 + $0x80] sm:$0xff]
    %v118 = vld [vmem:[#allocation5 + $0x88] sm:$0xff]
    %v119 = vld [vmem:[#allocation5 + $0x90] sm:$0xff]
    %v120 = vld [vmem:[#allocation5 + $0x98] sm:$0xff]
    %v121 = vld [vmem:[#allocation5 + $0xa0] sm:$0xff]
    %v122 = vld [vmem:[#allocation5 + $0xa8] sm:$0xff]
    %v123 = vld [vmem:[#allocation5 + $0xb0] sm:$0xff]
    %v124 = vld [vmem:[#allocation5 + $0xb8] sm:$0xff]
    %v125 = vld [vmem:[#allocation5 + $0xc0] sm:$0xff]
    %v126 = vld [vmem:[#allocation5 + $0xc8] sm:$0xff]
    %v127 = vld [vmem:[#allocation5 + $0xd0] sm:$0xff]
    %v128 = vld [vmem:[#allocation5 + $0xd8] sm:$0xff]
    %v129 = vld [vmem:[#allocation5 + $0xe0] sm:$0xff]
    %v130 = vld [vmem:[#allocation5 + $0xe8] sm:$0xff]
    %v131 = vld [vmem:[#allocation5 + $0xf0] sm:$0xff]
    %v132 = vld [vmem:[#allocation5 + $0xf8] sm:$0xff]
    %v133 = vld [vmem:[#allocation5 + $0x100] sm:$0xff]
    %v134 = vld [vmem:[#allocation5 + $0x108] sm:$0xff]
    %v135 = vld [vmem:[#allocation5 + $0x110] sm:$0xff]
    %v136 = vld [vmem:[#allocation5 + $0x118] sm:$0xff]
    %v137 = vld [vmem:[#allocation5 + $0x120] sm:$0xff]
    %v138 = vld [vmem:[#allocation5 + $0x128] sm:$0xff]
    %v139 = vld [vmem:[#allocation5 + $0x130] sm:$0xff]
    %v140 = vld [vmem:[#allocation5 + $0x138] sm:$0xff]
    %v141 = vld [vmem:[#allocation5 + $0x140] sm:$0xff]
    %v142 = vld [vmem:[#allocation5 + $0x148] sm:$0xff]
    %v143 = vld [vmem:[#allocation5 + $0x150] sm:$0xff]
    %v144 = vld [vmem:[#allocation5 + $0x158] sm:$0xff]
    %v145 = vld [vmem:[#allocation5 + $0x160] sm:$0xff]
    %v146 = vld [vmem:[#allocation5 + $0x168] sm:$0xff]
    %v147 = vld [vmem:[#allocation5 + $0x170] sm:$0xff]
    %v148 = vld [vmem:[#allocation5 + $0x178] sm:$0xff]
    %v149 = vld [vmem:[#allocation5 + $0x180] sm:$0xff]
    %v150 = vld [vmem:[#allocation5 + $0x188] sm:$0xff]
    %v151 = vld [vmem:[#allocation5 + $0x190] sm:$0xff]
    %v152 = vld [vmem:[#allocation5 + $0x198] sm:$0xff]
    %v153 = vld [vmem:[#allocation5 + $0x1a0] sm:$0xff]
    %v154 = vld [vmem:[#allocation5 + $0x1a8] sm:$0xff]
    %v155 = vld [vmem:[#allocation5 + $0x1b0] sm:$0xff]
    %v156 = vld [vmem:[#allocation5 + $0x1b8] sm:$0xff]
    %v157 = vld [vmem:[#allocation5 + $0x1c0] sm:$0xff]
    %v158 = vld [vmem:[#allocation5 + $0x1c8] sm:$0xff]
    %v159 = vld [vmem:[#allocation5 + $0x1d0] sm:$0xff]
    %v160 = vld [vmem:[#allocation5 + $0x1d8] sm:$0xff]
    %v161 = vld [vmem:[#allocation5 + $0x1e0] sm:$0xff]
    %v162 = vld [vmem:[#allocation5 + $0x1e8] sm:$0xff]
    %v163 = vld [vmem:[#allocation5 + $0x1f0] sm:$0xff]
    %v164 = vld [vmem:[#allocation5 + $0x1f8] sm:$0xff]
    %v165 = vld [vmem:[#allocation5 + $0x200] sm:$0xff]
    %v166 = vld [vmem:[#allocation5 + $0x208] sm:$0xff]
    %v167 = vld [vmem:[#allocation5 + $0x210] sm:$0xff]
    %v168 = vld [vmem:[#allocation5 + $0x218] sm:$0xff]
    %v169 = vld [vmem:[#allocation5 + $0x220] sm:$0xff]
    %v170 = vld [vmem:[#allocation5 + $0x228] sm:$0xff]
    %v171 = vld [vmem:[#allocation5 + $0x230] sm:$0xff]
    %v172 = vld [vmem:[#allocation5 + $0x238] sm:$0xff]
    %v173 = vld [vmem:[#allocation5 + $0x240] sm:$0xff]
    %v174 = vld [vmem:[#allocation5 + $0x248] sm:$0xff]
    %v175 = vld [vmem:[#allocation5 + $0x250] sm:$0xff]
    %v176 = vld [vmem:[#allocation5 + $0x258] sm:$0xff]
    %v177 = vld [vmem:[#allocation5 + $0x260] sm:$0xff]
    %v178 = vld [vmem:[#allocation5 + $0x268] sm:$0xff]
    %v179 = vld [vmem:[#allocation5 + $0x270] sm:$0xff]
    %v180 = vld [vmem:[#allocation5 + $0x278] sm:$0xff]
    %v181 = vld [vmem:[#allocation5 + $0x280] sm:$0xff]
    %v182 = vld [vmem:[#allocation5 + $0x288] sm:$0xff]
    %v183 = vld [vmem:[#allocation5 + $0x290] sm:$0xff]
    %v184 = vld [vmem:[#allocation5 + $0x298] sm:$0xff]
    %v185 = vld [vmem:[#allocation5 + $0x2a0] sm:$0xff]
    %v186 = vld [vmem:[#allocation5 + $0x2a8] sm:$0xff]
    %v187 = vld [vmem:[#allocation5 + $0x2b0] sm:$0xff]
    %v188 = vld [vmem:[#allocation5 + $0x2b8] sm:$0xff]
    %v189 = vld [vmem:[#allocation5 + $0x2c0] sm:$0xff]
    %v190 = vld [vmem:[#allocation5 + $0x2c8] sm:$0xff]
    %v191 = vld [vmem:[#allocation5 + $0x2d0] sm:$0xff]
    %v192 = vld [vmem:[#allocation5 + $0x2d8] sm:$0xff]
    %v193 = vld [vmem:[#allocation5 + $0x2e0] sm:$0xff]
    %v194 = vld [vmem:[#allocation5 + $0x2e8] sm:$0xff]
    %v195 = vld [vmem:[#allocation5 + $0x2f0] sm:$0xff]
    %v196 = vld [vmem:[#allocation5 + $0x2f8] sm:$0xff]
    %v197 = vld [vmem:[#allocation5 + $0x300] sm:$0xff]
    %v198 = vld [vmem:[#allocation5 + $0x308] sm:$0xff]
    %v199 = vld [vmem:[#allocation5 + $0x310] sm:$0xff]
    %v200 = vld [vmem:[#allocation5 + $0x318] sm:$0xff]
    %v201 = vld [vmem:[#allocation5 + $0x320] sm:$0xff]
    %v202 = vld [vmem:[#allocation5 + $0x328] sm:$0xff]
    %v203 = vld [vmem:[#allocation5 + $0x330] sm:$0xff]
    %v204 = vld [vmem:[#allocation5 + $0x338] sm:$0xff]
    %v205 = vld [vmem:[#allocation5 + $0x340] sm:$0xff]
    %v206 = vld [vmem:[#allocation5 + $0x348] sm:$0xff]
    %v207 = vld [vmem:[#allocation5 + $0x350] sm:$0xff]
    %v208 = vld [vmem:[#allocation5 + $0x358] sm:$0xff]
    %v209 = vld [vmem:[#allocation5 + $0x360] sm:$0xff]
    %v210 = vld [vmem:[#allocation5 + $0x368] sm:$0xff]
    %v211 = vld [vmem:[#allocation5 + $0x370] sm:$0xff]
    %v212 = vld [vmem:[#allocation5 + $0x378] sm:$0xff]
    %v213 = vld [vmem:[#allocation5 + $0x380] sm:$0xff]
    %v214 = vld [vmem:[#allocation5 + $0x388] sm:$0xff]
    %v215 = vld [vmem:[#allocation5 + $0x390] sm:$0xff]
    %v216 = vld [vmem:[#allocation5 + $0x398] sm:$0xff]
    %v217 = vld [vmem:[#allocation5 + $0x3a0] sm:$0xff]
    %v218 = vld [vmem:[#allocation5 + $0x3a8] sm:$0xff]
    %v219 = vld [vmem:[#allocation5 + $0x3b0] sm:$0xff]
    %v220 = vld [vmem:[#allocation5 + $0x3b8] sm:$0xff]
    %v221 = vld [vmem:[#allocation5 + $0x3c0] sm:$0xff]
    %v222 = vld [vmem:[#allocation5 + $0x3c8] sm:$0xff]
    %v223 = vld [vmem:[#allocation5 + $0x3d0] sm:$0xff]
    %v224 = vld [vmem:[#allocation5 + $0x3d8] sm:$0xff]
    %v225 = vld [vmem:[#allocation5 + $0x3e0] sm:$0xff]
    %v226 = vld [vmem:[#allocation5 + $0x3e8] sm:$0xff]
    %v227 = vld [vmem:[#allocation5 + $0x3f0] sm:$0xff]
    %v228 = vld [vmem:[#allocation5 + $0x3f8] sm:$0xff]
    %v229 = vld [vmem:[#allocation5 + $0x400] sm:$0xff]
    %v230 = vld [vmem:[#allocation5 + $0x408] sm:$0xff]
    %v231 = vld [vmem:[#allocation5 + $0x410] sm:$0xff]
    %v232 = vld [vmem:[#allocation5 + $0x418] sm:$0xff]
    %v233 = vld [vmem:[#allocation5 + $0x420] sm:$0xff]
    %v234 = vld [vmem:[#allocation5 + $0x428] sm:$0xff]
    %v235 = vld [vmem:[#allocation5 + $0x430] sm:$0xff]
    %v236 = vld [vmem:[#allocation5 + $0x438] sm:$0xff]
    %v237 = vld [vmem:[#allocation5 + $0x440] sm:$0xff]
    %v238 = vld [vmem:[#allocation5 + $0x448] sm:$0xff]
    %v239 = vld [vmem:[#allocation5 + $0x450] sm:$0xff]
    %v240 = vld [vmem:[#allocation5 + $0x458] sm:$0xff]
    %v241 = vld [vmem:[#allocation5 + $0x460] sm:$0xff]
    %v242 = vld [vmem:[#allocation5 + $0x468] sm:$0xff]
    %v243 = vld [vmem:[#allocation5 + $0x470] sm:$0xff]
    %v244 = vld [vmem:[#allocation5 + $0x478] sm:$0xff]
    %v245 = vld [vmem:[#allocation5 + $0x480] sm:$0xff]
    %v246 = vld [vmem:[#allocation5 + $0x488] sm:$0xff]
    %v247 = vld [vmem:[#allocation5 + $0x490] sm:$0xff]
    %v248 = vld [vmem:[#allocation5 + $0x498] sm:$0xff]
    %v249 = vld [vmem:[#allocation5 + $0x4a0] sm:$0xff]
    %v250 = vld [vmem:[#allocation5 + $0x4a8] sm:$0xff]
    %v251 = vld [vmem:[#allocation5 + $0x4b0] sm:$0xff]
    %v252 = vld [vmem:[#allocation5 + $0x4b8] sm:$0xff]
    %v253 = vld [vmem:[#allocation5 + $0x4c0] sm:$0xff]
    %v254 = vld [vmem:[#allocation5 + $0x4c8] sm:$0xff]
    %v255 = vld [vmem:[#allocation5 + $0x4d0] sm:$0xff]
    %v256 = vld [vmem:[#allocation5 + $0x4d8] sm:$0xff]
    %v257 = vld [vmem:[#allocation5 + $0x4e0] sm:$0xff]
    %v258 = vld [vmem:[#allocation5 + $0x4e8] sm:$0xff]
    %v259 = vld [vmem:[#allocation5 + $0x4f0] sm:$0xff]
    %v260 = vld [vmem:[#allocation5 + $0x4f8] sm:$0xff]
    %v261 = vld [vmem:[#allocation5 + $0x500] sm:$0xff]
    %v262 = vld [vmem:[#allocation5 + $0x508] sm:$0xff]
    %v263 = vld [vmem:[#allocation5 + $0x510] sm:$0xff]
    %v264 = vld [vmem:[#allocation5 + $0x518] sm:$0xff]
    %v265 = vld [vmem:[#allocation5 + $0x520] sm:$0xff]
    %v266 = vld [vmem:[#allocation5 + $0x528] sm:$0xff]
    %v267 = vld [vmem:[#allocation5 + $0x530] sm:$0xff]
    %v268 = vld [vmem:[#allocation5 + $0x538] sm:$0xff]
    %v269 = vld [vmem:[#allocation5 + $0x540] sm:$0xff]
    %v270 = vld [vmem:[#allocation5 + $0x548] sm:$0xff]
    %v271 = vld [vmem:[#allocation5 + $0x550] sm:$0xff]
    %v272 = vld [vmem:[#allocation5 + $0x558] sm:$0xff]
    %v273 = vld [vmem:[#allocation5 + $0x560] sm:$0xff]
    %v274 = vld [vmem:[#allocation5 + $0x568] sm:$0xff]
    %v275 = vld [vmem:[#allocation5 + $0x570] sm:$0xff]
    %v276 = vld [vmem:[#allocation5 + $0x578] sm:$0xff]
    %v277 = vld [vmem:[#allocation5 + $0x580] sm:$0xff]
    %v278 = vld [vmem:[#allocation5 + $0x588] sm:$0xff]
    %v279 = vld [vmem:[#allocation5 + $0x590] sm:$0xff]
    %v280 = vld [vmem:[#allocation5 + $0x598] sm:$0xff]
    %v281 = vld [vmem:[#allocation5 + $0x5a0] sm:$0xff]
    %v282 = vld [vmem:[#allocation5 + $0x5a8] sm:$0xff]
    %v283 = vld [vmem:[#allocation5 + $0x5b0] sm:$0xff]
    %v284 = vld [vmem:[#allocation5 + $0x5b8] sm:$0xff]
    %v285 = vld [vmem:[#allocation5 + $0x5c0] sm:$0xff]
    %v286 = vld [vmem:[#allocation5 + $0x5c8] sm:$0xff]
    %v287 = vld [vmem:[#allocation5 + $0x5d0] sm:$0xff]
    %v288 = vld [vmem:[#allocation5 + $0x5d8] sm:$0xff]
    %v289 = vld [vmem:[#allocation5 + $0x5e0] sm:$0xff]
    %v290 = vld [vmem:[#allocation5 + $0x5e8] sm:$0xff]
    %v291 = vld [vmem:[#allocation5 + $0x5f0] sm:$0xff]
    %v292 = vld [vmem:[#allocation5 + $0x5f8] sm:$0xff]
    %v293 = vld [vmem:[#allocation5 + $0x600] sm:$0xff]
    %v294 = vld [vmem:[#allocation5 + $0x608] sm:$0xff]
    %v295 = vld [vmem:[#allocation5 + $0x610] sm:$0xff]
    %v296 = vld [vmem:[#allocation5 + $0x618] sm:$0xff]
    %v297 = vld [vmem:[#allocation5 + $0x620] sm:$0xff]
    %v298 = vld [vmem:[#allocation5 + $0x628] sm:$0xff]
    %v299 = vld [vmem:[#allocation5 + $0x630] sm:$0xff]
    %v300 = vld [vmem:[#allocation5 + $0x638] sm:$0xff]
    %v301 = vld [vmem:[#allocation5 + $0x640] sm:$0xff]
    %v302 = vld [vmem:[#allocation5 + $0x648] sm:$0xff]
    %v303 = vld [vmem:[#allocation5 + $0x650] sm:$0xff]
    %v304 = vld [vmem:[#allocation5 + $0x658] sm:$0xff]
    %v305 = vld [vmem:[#allocation5 + $0x660] sm:$0xff]
    %v306 = vld [vmem:[#allocation5 + $0x668] sm:$0xff]
    %v307 = vld [vmem:[#allocation5 + $0x670] sm:$0xff]
    %v308 = vld [vmem:[#allocation5 + $0x678] sm:$0xff]
    %v309 = vld [vmem:[#allocation5 + $0x680] sm:$0xff]
    %v310 = vld [vmem:[#allocation5 + $0x688] sm:$0xff]
    %v311 = vld [vmem:[#allocation5 + $0x690] sm:$0xff]
    %v312 = vld [vmem:[#allocation5 + $0x698] sm:$0xff]
    %v313 = vld [vmem:[#allocation5 + $0x6a0] sm:$0xff]
    %v314 = vld [vmem:[#allocation5 + $0x6a8] sm:$0xff]
    %v315 = vld [vmem:[#allocation5 + $0x6b0] sm:$0xff]
    %v316 = vld [vmem:[#allocation5 + $0x6b8] sm:$0xff]
    %v317 = vld [vmem:[#allocation5 + $0x6c0] sm:$0xff]
    %v318 = vld [vmem:[#allocation5 + $0x6c8] sm:$0xff]
    %v319 = vld [vmem:[#allocation5 + $0x6d0] sm:$0xff]
    %v320 = vld [vmem:[#allocation5 + $0x6d8] sm:$0xff]
    %v321 = vld [vmem:[#allocation5 + $0x6e0] sm:$0xff]
    %v322 = vld [vmem:[#allocation5 + $0x6e8] sm:$0xff]
    %v323 = vld [vmem:[#allocation5 + $0x6f0] sm:$0xff]
    %v324 = vld [vmem:[#allocation5 + $0x6f8] sm:$0xff]
    %v325 = vld [vmem:[#allocation5 + $0x700] sm:$0xff]
    %v326 = vld [vmem:[#allocation5 + $0x708] sm:$0xff]
    %v327 = vld [vmem:[#allocation5 + $0x710] sm:$0xff]
    %v328 = vld [vmem:[#allocation5 + $0x718] sm:$0xff]
    %v329 = vld [vmem:[#allocation5 + $0x720] sm:$0xff]
    %v330 = vld [vmem:[#allocation5 + $0x728] sm:$0xff]
    %v331 = vld [vmem:[#allocation5 + $0x730] sm:$0xff]
    %v332 = vld [vmem:[#allocation5 + $0x738] sm:$0xff]
    %v333 = vld [vmem:[#allocation5 + $0x740] sm:$0xff]
    %v334 = vld [vmem:[#allocation5 + $0x748] sm:$0xff]
    %v335 = vld [vmem:[#allocation5 + $0x750] sm:$0xff]
    %v336 = vld [vmem:[#allocation5 + $0x758] sm:$0xff]
    %v337 = vld [vmem:[#allocation5 + $0x760] sm:$0xff]
    %v338 = vld [vmem:[#allocation5 + $0x768] sm:$0xff]
    %v339 = vld [vmem:[#allocation5 + $0x770] sm:$0xff]
    %v340 = vld [vmem:[#allocation5 + $0x778] sm:$0xff]
    %v341 = vld [vmem:[#allocation5 + $0x780] sm:$0xff]
    %v342 = vld [vmem:[#allocation5 + $0x788] sm:$0xff]
    %v343 = vld [vmem:[#allocation5 + $0x790] sm:$0xff]
    %v344 = vld [vmem:[#allocation5 + $0x798] sm:$0xff]
    %v345 = vld [vmem:[#allocation5 + $0x7a0] sm:$0xff]
    %v346 = vld [vmem:[#allocation5 + $0x7a8] sm:$0xff]
    %v347 = vld [vmem:[#allocation5 + $0x7b0] sm:$0xff]
    %v348 = vld [vmem:[#allocation5 + $0x7b8] sm:$0xff]
    %v349 = vld [vmem:[#allocation5 + $0x7c0] sm:$0xff]
    %v350 = vld [vmem:[#allocation5 + $0x7c8] sm:$0xff]
    %v351 = vld [vmem:[#allocation5 + $0x7d0] sm:$0xff]
    %v352 = vld [vmem:[#allocation5 + $0x7d8] sm:$0xff]
    %v353 = vld [vmem:[#allocation5 + $0x7e0] sm:$0xff]
    %v354 = vld [vmem:[#allocation5 + $0x7e8] sm:$0xff]
    %v355 = vld [vmem:[#allocation5 + $0x7f0] sm:$0xff]
    %v356 = vld [vmem:[#allocation5 + $0x7f8] sm:$0xff]
    %v357 = vld [vmem:[#allocation5 + $0x800] sm:$0xff]
    %v358 = vld [vmem:[#allocation5 + $0x808] sm:$0xff]
    %v359 = vld [vmem:[#allocation5 + $0x810] sm:$0xff]
    %v360 = vld [vmem:[#allocation5 + $0x818] sm:$0xff]
    %v361 = vld [vmem:[#allocation5 + $0x820] sm:$0xff]
    %v362 = vld [vmem:[#allocation5 + $0x828] sm:$0xff]
    %v363 = vld [vmem:[#allocation5 + $0x830] sm:$0xff]
    %v364 = vld [vmem:[#allocation5 + $0x838] sm:$0xff]
    %v365 = vld [vmem:[#allocation5 + $0x840] sm:$0xff]
    %v366 = vld [vmem:[#allocation5 + $0x848] sm:$0xff]
    %v367 = vld [vmem:[#allocation5 + $0x850] sm:$0xff]
    %v368 = vld [vmem:[#allocation5 + $0x858] sm:$0xff]
    %v369 = vld [vmem:[#allocation5 + $0x860] sm:$0xff]
    %v370 = vld [vmem:[#allocation5 + $0x868] sm:$0xff]
    %v371 = vld [vmem:[#allocation5 + $0x870] sm:$0xff]
    %v372 = vld [vmem:[#allocation5 + $0x878] sm:$0xff]
    %v373 = vld [vmem:[#allocation5 + $0x880] sm:$0xff]
    %v374 = vld [vmem:[#allocation5 + $0x888] sm:$0xff]
    %v375 = vld [vmem:[#allocation5 + $0x890] sm:$0xff]
    %v376 = vld [vmem:[#allocation5 + $0x898] sm:$0xff]
    %v377 = vld [vmem:[#allocation5 + $0x8a0] sm:$0xff]
    %v378 = vld [vmem:[#allocation5 + $0x8a8] sm:$0xff]
    %v379 = vld [vmem:[#allocation5 + $0x8b0] sm:$0xff]
    %v380 = vld [vmem:[#allocation5 + $0x8b8] sm:$0xff]
    %v381 = vld [vmem:[#allocation5 + $0x8c0] sm:$0xff]
    %v382 = vld [vmem:[#allocation5 + $0x8c8] sm:$0xff]
    %v383 = vld [vmem:[#allocation5 + $0x8d0] sm:$0xff]
    %v384 = vld [vmem:[#allocation5 + $0x8d8] sm:$0xff]
    %v385 = vld [vmem:[#allocation5 + $0x8e0] sm:$0xff]
    %v386 = vld [vmem:[#allocation5 + $0x8e8] sm:$0xff]
    %v387 = vld [vmem:[#allocation5 + $0x8f0] sm:$0xff]
    %v388 = vld [vmem:[#allocation5 + $0x8f8] sm:$0xff]
    %v389 = vld [vmem:[#allocation5 + $0x900] sm:$0xff]
    %v390 = vld [vmem:[#allocation5 + $0x908] sm:$0xff]
    %v391 = vld [vmem:[#allocation5 + $0x910] sm:$0xff]
    %v392 = vld [vmem:[#allocation5 + $0x918] sm:$0xff]
    %v393 = vld [vmem:[#allocation5 + $0x920] sm:$0xff]
    %v394 = vld [vmem:[#allocation5 + $0x928] sm:$0xff]
    %v395 = vld [vmem:[#allocation5 + $0x930] sm:$0xff]
    %v396 = vld [vmem:[#allocation5 + $0x938] sm:$0xff]
    %v397 = vld [vmem:[#allocation5 + $0x940] sm:$0xff]
    %v398 = vld [vmem:[#allocation5 + $0x948] sm:$0xff]
    %v399 = vld [vmem:[#allocation5 + $0x950] sm:$0xff]
    %v400 = vld [vmem:[#allocation5 + $0x958] sm:$0xff]
    %v401 = vld [vmem:[#allocation5 + $0x960] sm:$0xff]
    %v402 = vld [vmem:[#allocation5 + $0x968] sm:$0xff]
    %v403 = vld [vmem:[#allocation5 + $0x970] sm:$0xff]
    %v404 = vld [vmem:[#allocation5 + $0x978] sm:$0xff]
    %v405 = vld [vmem:[#allocation5 + $0x980] sm:$0xff]
    %v406 = vld [vmem:[#allocation5 + $0x988] sm:$0xff]
    %v407 = vld [vmem:[#allocation5 + $0x990] sm:$0xff]
    %v408 = vld [vmem:[#allocation5 + $0x998] sm:$0xff]
    %v409 = vld [vmem:[#allocation5 + $0x9a0] sm:$0xff]
    %v410 = vld [vmem:[#allocation5 + $0x9a8] sm:$0xff]
    %v411 = vld [vmem:[#allocation5 + $0x9b0] sm:$0xff]
    %v412 = vld [vmem:[#allocation5 + $0x9b8] sm:$0xff]
    %v413 = vld [vmem:[#allocation5 + $0x9c0] sm:$0xff]
    %v414 = vld [vmem:[#allocation5 + $0x9c8] sm:$0xff]
    %v415 = vld [vmem:[#allocation5 + $0x9d0] sm:$0xff]
    %v416 = vld [vmem:[#allocation5 + $0x9d8] sm:$0xff]
    %v417 = vld [vmem:[#allocation5 + $0x9e0] sm:$0xff]
    %v418 = vld [vmem:[#allocation5 + $0x9e8] sm:$0xff]
    %v419 = vld [vmem:[#allocation5 + $0x9f0] sm:$0xff]
    %v420 = vld [vmem:[#allocation5 + $0x9f8] sm:$0xff]
    %v421 = vld [vmem:[#allocation5 + $0xa00] sm:$0xff]
    %v422 = vld [vmem:[#allocation5 + $0xa08] sm:$0xff]
    %v423 = vld [vmem:[#allocation5 + $0xa10] sm:$0xff]
    %v424 = vld [vmem:[#allocation5 + $0xa18] sm:$0xff]
    %v425 = vld [vmem:[#allocation5 + $0xa20] sm:$0xff]
    %v426 = vld [vmem:[#allocation5 + $0xa28] sm:$0xff]
    %v427 = vld [vmem:[#allocation5 + $0xa30] sm:$0xff]
    %v428 = vld [vmem:[#allocation5 + $0xa38] sm:$0xff]
    %v429 = vld [vmem:[#allocation5 + $0xa40] sm:$0xff]
    %v430 = vld [vmem:[#allocation5 + $0xa48] sm:$0xff]
    %v431 = vld [vmem:[#allocation5 + $0xa50] sm:$0xff]
    %v432 = vld [vmem:[#allocation5 + $0xa58] sm:$0xff]
    %v433 = vld [vmem:[#allocation5 + $0xa60] sm:$0xff]
    %v434 = vld [vmem:[#allocation5 + $0xa68] sm:$0xff]
    %v435 = vld [vmem:[#allocation5 + $0xa70] sm:$0xff]
    %v436 = vld [vmem:[#allocation5 + $0xa78] sm:$0xff]
    %v437 = vld [vmem:[#allocation5 + $0xa80] sm:$0xff]
    %v438 = vld [vmem:[#allocation5 + $0xa88] sm:$0xff]
    %v439 = vld [vmem:[#allocation5 + $0xa90] sm:$0xff]
    %v440 = vld [vmem:[#allocation5 + $0xa98] sm:$0xff]
    %v441 = vld [vmem:[#allocation5 + $0xaa0] sm:$0xff]
    %v442 = vld [vmem:[#allocation5 + $0xaa8] sm:$0xff]
    %v443 = vld [vmem:[#allocation5 + $0xab0] sm:$0xff]
    %v444 = vld [vmem:[#allocation5 + $0xab8] sm:$0xff]
    %v445 = vld [vmem:[#allocation5 + $0xac0] sm:$0xff]
    %v446 = vld [vmem:[#allocation5 + $0xac8] sm:$0xff]
    %v447 = vld [vmem:[#allocation5 + $0xad0] sm:$0xff]
    %v448 = vld [vmem:[#allocation5 + $0xad8] sm:$0xff]
    %v449 = vld [vmem:[#allocation5 + $0xae0] sm:$0xff]
    %v450 = vld [vmem:[#allocation5 + $0xae8] sm:$0xff]
    %v451 = vld [vmem:[#allocation5 + $0xaf0] sm:$0xff]
    %v452 = vld [vmem:[#allocation5 + $0xaf8] sm:$0xff]
    %v453 = vld [vmem:[#allocation5 + $0xb00] sm:$0xff]
    %v454 = vld [vmem:[#allocation5 + $0xb08] sm:$0xff]
    %v455 = vld [vmem:[#allocation5 + $0xb10] sm:$0xff]
    %v456 = vld [vmem:[#allocation5 + $0xb18] sm:$0xff]
    %v457 = vld [vmem:[#allocation5 + $0xb20] sm:$0xff]
    %v458 = vld [vmem:[#allocation5 + $0xb28] sm:$0xff]
    %v459 = vld [vmem:[#allocation5 + $0xb30] sm:$0xff]
    %v460 = vld [vmem:[#allocation5 + $0xb38] sm:$0xff]
    %v461 = vld [vmem:[#allocation5 + $0xb40] sm:$0xff]
    %v462 = vld [vmem:[#allocation5 + $0xb48] sm:$0xff]
    %v463 = vld [vmem:[#allocation5 + $0xb50] sm:$0xff]
    %v464 = vld [vmem:[#allocation5 + $0xb58] sm:$0xff]
    %v465 = vld [vmem:[#allocation5 + $0xb60] sm:$0xff]
    %v466 = vld [vmem:[#allocation5 + $0xb68] sm:$0xff]
    %v467 = vld [vmem:[#allocation5 + $0xb70] sm:$0xff]
    %v468 = vld [vmem:[#allocation5 + $0xb78] sm:$0xff]
    %v469 = vld [vmem:[#allocation5 + $0xb80] sm:$0xff]
    %v470 = vld [vmem:[#allocation5 + $0xb88] sm:$0xff]
    %v471 = vld [vmem:[#allocation5 + $0xb90] sm:$0xff]
    %v472 = vld [vmem:[#allocation5 + $0xb98] sm:$0xff]
    %v473 = vld [vmem:[#allocation5 + $0xba0] sm:$0xff]
    %v474 = vld [vmem:[#allocation5 + $0xba8] sm:$0xff]
    %v475 = vld [vmem:[#allocation5 + $0xbb0] sm:$0xff]
    %v476 = vld [vmem:[#allocation5 + $0xbb8] sm:$0xff]
    %v477 = vld [vmem:[#allocation5 + $0xbc0] sm:$0xff]
    %v478 = vld [vmem:[#allocation5 + $0xbc8] sm:$0xff]
    %v479 = vld [vmem:[#allocation5 + $0xbd0] sm:$0xff]
    %v480 = vld [vmem:[#allocation5 + $0xbd8] sm:$0xff]
    %v481 = vld [vmem:[#allocation5 + $0xbe0] sm:$0xff]
    %v482 = vld [vmem:[#allocation5 + $0xbe8] sm:$0xff]
    %v483 = vld [vmem:[#allocation5 + $0xbf0] sm:$0xff]
    %v484 = vld [vmem:[#allocation5 + $0xbf8] sm:$0xff]
    %v485 = vld [vmem:[#allocation5 + $0xc00] sm:$0xff]
    %v486 = vld [vmem:[#allocation5 + $0xc08] sm:$0xff]
    %v487 = vld [vmem:[#allocation5 + $0xc10] sm:$0xff]
    %v488 = vld [vmem:[#allocation5 + $0xc18] sm:$0xff]
    %v489 = vld [vmem:[#allocation5 + $0xc20] sm:$0xff]
    %v490 = vld [vmem:[#allocation5 + $0xc28] sm:$0xff]
    %v491 = vld [vmem:[#allocation5 + $0xc30] sm:$0xff]
    %v492 = vld [vmem:[#allocation5 + $0xc38] sm:$0xff]
    %v493 = vld [vmem:[#allocation5 + $0xc40] sm:$0xff]
    %v494 = vld [vmem:[#allocation5 + $0xc48] sm:$0xff]
    %v495 = vld [vmem:[#allocation5 + $0xc50] sm:$0xff]
    %v496 = vld [vmem:[#allocation5 + $0xc58] sm:$0xff]
    %v497 = vld [vmem:[#allocation5 + $0xc60] sm:$0xff]
    %v498 = vld [vmem:[#allocation5 + $0xc68] sm:$0xff]
    %v499 = vld [vmem:[#allocation5 + $0xc70] sm:$0xff]
    %v500 = vld [vmem:[#allocation5 + $0xc78] sm:$0xff]
    %v501 = vld [vmem:[#allocation5 + $0xc80] sm:$0xff]
    %v502 = vld [vmem:[#allocation5 + $0xc88] sm:$0xff]
    %v503 = vld [vmem:[#allocation5 + $0xc90] sm:$0xff]
    %v504 = vld [vmem:[#allocation5 + $0xc98] sm:$0xff]
    %v505 = vld [vmem:[#allocation5 + $0xca0] sm:$0xff]
    %v506 = vld [vmem:[#allocation5 + $0xca8] sm:$0xff]
    %v507 = vld [vmem:[#allocation5 + $0xcb0] sm:$0xff]
    %v508 = vld [vmem:[#allocation5 + $0xcb8] sm:$0xff]
    %v509 = vld [vmem:[#allocation5 + $0xcc0] sm:$0xff]
    %v510 = vld [vmem:[#allocation5 + $0xcc8] sm:$0xff]
    %v511 = vld [vmem:[#allocation5 + $0xcd0] sm:$0xff]
    %v512 = vld [vmem:[#allocation5 + $0xcd8] sm:$0xff]
    %v513 = vld [vmem:[#allocation5 + $0xce0] sm:$0xff]
    %v514 = vld [vmem:[#allocation5 + $0xce8] sm:$0xff]
    %v515 = vld [vmem:[#allocation5 + $0xcf0] sm:$0xff]
    %v516 = vld [vmem:[#allocation5 + $0xcf8] sm:$0xff]
    %v517 = vld [vmem:[#allocation5 + $0xd00] sm:$0xff]
    %v518 = vld [vmem:[#allocation5 + $0xd08] sm:$0xff]
    %v519 = vld [vmem:[#allocation5 + $0xd10] sm:$0xff]
    %v520 = vld [vmem:[#allocation5 + $0xd18] sm:$0xff]
    %v521 = vld [vmem:[#allocation5 + $0xd20] sm:$0xff]
    %v522 = vld [vmem:[#allocation5 + $0xd28] sm:$0xff]
    %v523 = vld [vmem:[#allocation5 + $0xd30] sm:$0xff]
    %v524 = vld [vmem:[#allocation5 + $0xd38] sm:$0xff]
    %v525 = vld [vmem:[#allocation5 + $0xd40] sm:$0xff]
    %v526 = vld [vmem:[#allocation5 + $0xd48] sm:$0xff]
    %v527 = vld [vmem:[#allocation5 + $0xd50] sm:$0xff]
    %v528 = vld [vmem:[#allocation5 + $0xd58] sm:$0xff]
    %v529 = vld [vmem:[#allocation5 + $0xd60] sm:$0xff]
    %v530 = vld [vmem:[#allocation5 + $0xd68] sm:$0xff]
    %v531 = vld [vmem:[#allocation5 + $0xd70] sm:$0xff]
    %v532 = vld [vmem:[#allocation5 + $0xd78] sm:$0xff]
    %v533 = vld [vmem:[#allocation5 + $0xd80] sm:$0xff]
    %v534 = vld [vmem:[#allocation5 + $0xd88] sm:$0xff]
    %v535 = vld [vmem:[#allocation5 + $0xd90] sm:$0xff]
    %v536 = vld [vmem:[#allocation5 + $0xd98] sm:$0xff]
    %v537 = vld [vmem:[#allocation5 + $0xda0] sm:$0xff]
    %v538 = vld [vmem:[#allocation5 + $0xda8] sm:$0xff]
    %v539 = vld [vmem:[#allocation5 + $0xdb0] sm:$0xff]
    %v540 = vld [vmem:[#allocation5 + $0xdb8] sm:$0xff]
    %v541 = vld [vmem:[#allocation5 + $0xdc0] sm:$0xff]
    %v542 = vld [vmem:[#allocation5 + $0xdc8] sm:$0xff]
    %v543 = vld [vmem:[#allocation5 + $0xdd0] sm:$0xff]
    %v544 = vld [vmem:[#allocation5 + $0xdd8] sm:$0xff]
    %v545 = vld [vmem:[#allocation5 + $0xde0] sm:$0xff]
    %v546 = vld [vmem:[#allocation5 + $0xde8] sm:$0xff]
    %v547 = vld [vmem:[#allocation5 + $0xdf0] sm:$0xff]
    %v548 = vld [vmem:[#allocation5 + $0xdf8] sm:$0xff]
    %v549 = vld [vmem:[#allocation5 + $0xe00] sm:$0xff]
    %v550 = vld [vmem:[#allocation5 + $0xe08] sm:$0xff]
    %v551 = vld [vmem:[#allocation5 + $0xe10] sm:$0xff]
    %v552 = vld [vmem:[#allocation5 + $0xe18] sm:$0xff]
    %v553 = vld [vmem:[#allocation5 + $0xe20] sm:$0xff]
    %v554 = vld [vmem:[#allocation5 + $0xe28] sm:$0xff]
    %v555 = vld [vmem:[#allocation5 + $0xe30] sm:$0xff]
    %v556 = vld [vmem:[#allocation5 + $0xe38] sm:$0xff]
    %v557 = vld [vmem:[#allocation5 + $0xe40] sm:$0xff]
    %v558 = vld [vmem:[#allocation5 + $0xe48] sm:$0xff]
    %v559 = vld [vmem:[#allocation5 + $0xe50] sm:$0xff]
    %v560 = vld [vmem:[#allocation5 + $0xe58] sm:$0xff]
    %v561 = vld [vmem:[#allocation5 + $0xe60] sm:$0xff]
    %v562 = vld [vmem:[#allocation5 + $0xe68] sm:$0xff]
    %v563 = vld [vmem:[#allocation5 + $0xe70] sm:$0xff]
    %v564 = vld [vmem:[#allocation5 + $0xe78] sm:$0xff]
    %v565 = vld [vmem:[#allocation5 + $0xe80] sm:$0xff]
    %v566 = vld [vmem:[#allocation5 + $0xe88] sm:$0xff]
    %v567 = vld [vmem:[#allocation5 + $0xe90] sm:$0xff]
    %v568 = vld [vmem:[#allocation5 + $0xe98] sm:$0xff]
    %v569 = vld [vmem:[#allocation5 + $0xea0] sm:$0xff]
    %v570 = vld [vmem:[#allocation5 + $0xea8] sm:$0xff]
    %v571 = vld [vmem:[#allocation5 + $0xeb0] sm:$0xff]
    %v572 = vld [vmem:[#allocation5 + $0xeb8] sm:$0xff]
    %v573 = vld [vmem:[#allocation5 + $0xec0] sm:$0xff]
    %v574 = vld [vmem:[#allocation5 + $0xec8] sm:$0xff]
    %v575 = vld [vmem:[#allocation5 + $0xed0] sm:$0xff]
    %v576 = vld [vmem:[#allocation5 + $0xed8] sm:$0xff]
    %v577 = vld [vmem:[#allocation5 + $0xee0] sm:$0xff]
    %v578 = vld [vmem:[#allocation5 + $0xee8] sm:$0xff]
    %v579 = vld [vmem:[#allocation5 + $0xef0] sm:$0xff]
    %v580 = vld [vmem:[#allocation5 + $0xef8] sm:$0xff]
    %v581 = vld [vmem:[#allocation5 + $0xf00] sm:$0xff]
    %v582 = vld [vmem:[#allocation5 + $0xf08] sm:$0xff]
    %v583 = vld [vmem:[#allocation5 + $0xf10] sm:$0xff]
    %v584 = vld [vmem:[#allocation5 + $0xf18] sm:$0xff]
    %v585 = vld [vmem:[#allocation5 + $0xf20] sm:$0xff]
    %v586 = vld [vmem:[#allocation5 + $0xf28] sm:$0xff]
    %v587 = vld [vmem:[#allocation5 + $0xf30] sm:$0xff]
    %v588 = vld [vmem:[#allocation5 + $0xf38] sm:$0xff]
    %v589 = vld [vmem:[#allocation5 + $0xf40] sm:$0xff]
    %v590 = vld [vmem:[#allocation5 + $0xf48] sm:$0xff]
    %v591 = vld [vmem:[#allocation5 + $0xf50] sm:$0xff]
    %v592 = vld [vmem:[#allocation5 + $0xf58] sm:$0xff]
    %v593 = vld [vmem:[#allocation5 + $0xf60] sm:$0xff]
    %v594 = vld [vmem:[#allocation5 + $0xf68] sm:$0xff]
    %v595 = vld [vmem:[#allocation5 + $0xf70] sm:$0xff]
    %v596 = vld [vmem:[#allocation5 + $0xf78] sm:$0xff]
    %v597 = vld [vmem:[#allocation5 + $0xf80] sm:$0xff]
    %v598 = vld [vmem:[#allocation5 + $0xf88] sm:$0xff]
    %v599 = vld [vmem:[#allocation5 + $0xf90] sm:$0xff]
    %v600 = vld [vmem:[#allocation5 + $0xf98] sm:$0xff]
    %v601 = vld [vmem:[#allocation5 + $0xfa0] sm:$0xff]
    %v602 = vld [vmem:[#allocation5 + $0xfa8] sm:$0xff]
    %v603 = vld [vmem:[#allocation5 + $0xfb0] sm:$0xff]
    %v604 = vld [vmem:[#allocation5 + $0xfb8] sm:$0xff]
    %v605 = vld [vmem:[#allocation5 + $0xfc0] sm:$0xff]
    %v606 = vld [vmem:[#allocation5 + $0xfc8] sm:$0xff]
    %v607 = vld [vmem:[#allocation5 + $0xfd0] sm:$0xff]
    %v608 = vld [vmem:[#allocation5 + $0xfd8] sm:$0xff]
    %v609 = vld [vmem:[#allocation5 + $0xfe0] sm:$0xff]
    %v610 = vld [vmem:[#allocation5 + $0xfe8] sm:$0xff]
    %v611 = vld [vmem:[#allocation5 + $0xff0] sm:$0xff]
    %v612 = vld [vmem:[#allocation5 + $0xff8] sm:$0xff]
    %v613 = vld [vmem:[#allocation7] sm:$0xf]
    %v615 = vperm.slane %v613, 0
    %v616 = vperm.slane %v613, 1
    %v617 = vperm.slane %v613, 2
    %v618 = vperm.slane %v613, 3
    %623 = vmatpush.msra.mxu0 %v161
    %624 = vmatpush.msra.mxu0 %v157
    %625 = vmatpush.msra.mxu0 %v153
    %626 = vmatpush.msra.mxu0 %v149
    %627 = vmatpush.msra.mxu0 %v145
    %628 = vmatpush.msra.mxu0 %v141
    %629 = vmatpush.msra.mxu0 %v137
    %630 = vmatpush.msra.mxu0 %v133
    %631 = vmatpush.msra.mxu0 %v129
    %632 = vmatpush.msra.mxu0 %v125
    %633 = vmatpush.msra.mxu0 %v121
    %634 = vmatpush.msra.mxu0 %v117
    %635 = vmatpush.msra.mxu0 %v113
    %636 = vmatpush.msra.mxu0 %v109
    %637 = vmatpush.msra.mxu0 %v105
    %638 = vmatpush.msra.mxu0 %v101
    %639 = vmatmul.f32.gmra.mxu0 %v93
    %v640 = vpop.f32.mrf.mxu0
    %v641 = vadd.f32 %v615, %v640
    %642 = vdwg.mxu0
    %643 = vmatpush.msra.mxu0 %v225
    %644 = vmatpush.msra.mxu0 %v221
    %645 = vmatpush.msra.mxu0 %v217
    %646 = vmatpush.msra.mxu0 %v213
    %647 = vmatpush.msra.mxu0 %v209
    %648 = vmatpush.msra.mxu0 %v205
    %649 = vmatpush.msra.mxu0 %v201
    %650 = vmatpush.msra.mxu0 %v197
    %651 = vmatpush.msra.mxu0 %v193
    %652 = vmatpush.msra.mxu0 %v189
    %653 = vmatpush.msra.mxu0 %v185
    %654 = vmatpush.msra.mxu0 %v181
    %655 = vmatpush.msra.mxu0 %v177
    %656 = vmatpush.msra.mxu0 %v173
    %657 = vmatpush.msra.mxu0 %v169
    %658 = vmatpush.msra.mxu0 %v165
    %659 = vmatmul.f32.gmra.mxu0 %v94
    %v660 = vpop.f32.mrf.mxu0
    %v661 = vadd.f32 %v641, %v660
    %662 = vdwg.mxu0
    %663 = vmatpush.msra.mxu0 %v289
    %664 = vmatpush.msra.mxu0 %v285
    %665 = vmatpush.msra.mxu0 %v281
    %666 = vmatpush.msra.mxu0 %v277
    %667 = vmatpush.msra.mxu0 %v273
    %668 = vmatpush.msra.mxu0 %v269
    %669 = vmatpush.msra.mxu0 %v265
    %670 = vmatpush.msra.mxu0 %v261
    %671 = vmatpush.msra.mxu0 %v257
    %672 = vmatpush.msra.mxu0 %v253
    %673 = vmatpush.msra.mxu0 %v249
    %674 = vmatpush.msra.mxu0 %v245
    %675 = vmatpush.msra.mxu0 %v241
    %676 = vmatpush.msra.mxu0 %v237
    %677 = vmatpush.msra.mxu0 %v233
    %678 = vmatpush.msra.mxu0 %v229
    %679 = vmatmul.f32.gmra.mxu0 %v95
    %v680 = vpop.f32.mrf.mxu0
    %v681 = vadd.f32 %v661, %v680
    %682 = vdwg.mxu0
    %683 = vmatpush.msra.mxu0 %v353
    %684 = vmatpush.msra.mxu0 %v349
    %685 = vmatpush.msra.mxu0 %v345
    %686 = vmatpush.msra.mxu0 %v341
    %687 = vmatpush.msra.mxu0 %v337
    %688 = vmatpush.msra.mxu0 %v333
    %689 = vmatpush.msra.mxu0 %v329
    %690 = vmatpush.msra.mxu0 %v325
    %691 = vmatpush.msra.mxu0 %v321
    %692 = vmatpush.msra.mxu0 %v317
    %693 = vmatpush.msra.mxu0 %v313
    %694 = vmatpush.msra.mxu0 %v309
    %695 = vmatpush.msra.mxu0 %v305
    %696 = vmatpush.msra.mxu0 %v301
    %697 = vmatpush.msra.mxu0 %v297
    %698 = vmatpush.msra.mxu0 %v293
    %699 = vmatmul.f32.gmra.mxu0 %v96
    %v700 = vpop.f32.mrf.mxu0
    %v701 = vadd.f32 %v681, %v700
    %702 = vdwg.mxu0
    %703 = vmatpush.msra.mxu0 %v417
    %704 = vmatpush.msra.mxu0 %v413
    %705 = vmatpush.msra.mxu0 %v409
    %706 = vmatpush.msra.mxu0 %v405
    %707 = vmatpush.msra.mxu0 %v401
    %708 = vmatpush.msra.mxu0 %v397
    %709 = vmatpush.msra.mxu0 %v393
    %710 = vmatpush.msra.mxu0 %v389
    %711 = vmatpush.msra.mxu0 %v385
    %712 = vmatpush.msra.mxu0 %v381
    %713 = vmatpush.msra.mxu0 %v377
    %714 = vmatpush.msra.mxu0 %v373
    %715 = vmatpush.msra.mxu0 %v369
    %716 = vmatpush.msra.mxu0 %v365
    %717 = vmatpush.msra.mxu0 %v361
    %718 = vmatpush.msra.mxu0 %v357
    %719 = vmatmul.f32.gmra.mxu0 %v97
    %v720 = vpop.f32.mrf.mxu0
    %v721 = vadd.f32 %v701, %v720
    %722 = vdwg.mxu0
    %723 = vmatpush.msra.mxu0 %v481
    %724 = vmatpush.msra.mxu0 %v477
    %725 = vmatpush.msra.mxu0 %v473
    %726 = vmatpush.msra.mxu0 %v469
    %727 = vmatpush.msra.mxu0 %v465
    %728 = vmatpush.msra.mxu0 %v461
    %729 = vmatpush.msra.mxu0 %v457
    %730 = vmatpush.msra.mxu0 %v453
    %731 = vmatpush.msra.mxu0 %v449
    %732 = vmatpush.msra.mxu0 %v445
    %733 = vmatpush.msra.mxu0 %v441
    %734 = vmatpush.msra.mxu0 %v437
    %735 = vmatpush.msra.mxu0 %v433
    %736 = vmatpush.msra.mxu0 %v429
    %737 = vmatpush.msra.mxu0 %v425
    %738 = vmatpush.msra.mxu0 %v421
    %739 = vmatmul.f32.gmra.mxu0 %v98
    %v740 = vpop.f32.mrf.mxu0
    %v741 = vadd.f32 %v721, %v740
    %742 = vdwg.mxu0
    %743 = vmatpush.msra.mxu0 %v545
    %744 = vmatpush.msra.mxu0 %v541
    %745 = vmatpush.msra.mxu0 %v537
    %746 = vmatpush.msra.mxu0 %v533
    %747 = vmatpush.msra.mxu0 %v529
    %748 = vmatpush.msra.mxu0 %v525
    %749 = vmatpush.msra.mxu0 %v521
    %750 = vmatpush.msra.mxu0 %v517
    %751 = vmatpush.msra.mxu0 %v513
    %752 = vmatpush.msra.mxu0 %v509
    %753 = vmatpush.msra.mxu0 %v505
    %754 = vmatpush.msra.mxu0 %v501
    %755 = vmatpush.msra.mxu0 %v497
    %756 = vmatpush.msra.mxu0 %v493
    %757 = vmatpush.msra.mxu0 %v489
    %758 = vmatpush.msra.mxu0 %v485
    %759 = vmatmul.f32.gmra.mxu0 %v99
    %v760 = vpop.f32.mrf.mxu0
    %v761 = vadd.f32 %v741, %v760
    %762 = vdwg.mxu0
    %763 = vmatpush.msra.mxu0 %v609
    %764 = vmatpush.msra.mxu0 %v605
    %765 = vmatpush.msra.mxu0 %v601
    %766 = vmatpush.msra.mxu0 %v597
    %767 = vmatpush.msra.mxu0 %v593
    %768 = vmatpush.msra.mxu0 %v589
    %769 = vmatpush.msra.mxu0 %v585
    %770 = vmatpush.msra.mxu0 %v581
    %771 = vmatpush.msra.mxu0 %v577
    %772 = vmatpush.msra.mxu0 %v573
    %773 = vmatpush.msra.mxu0 %v569
    %774 = vmatpush.msra.mxu0 %v565
    %775 = vmatpush.msra.mxu0 %v561
    %776 = vmatpush.msra.mxu0 %v557
    %777 = vmatpush.msra.mxu0 %v553
    %778 = vmatpush.msra.mxu0 %v549
    %779 = vmatmul.f32.gmra.mxu0 %v100
    %v780 = vpop.f32.mrf.mxu0
    %v781 = vadd.f32 %v761, %v780
    %782 = vdwg.mxu0
    %783 = vmatpush.msra.mxu0 %v162
    %784 = vmatpush.msra.mxu0 %v158
    %785 = vmatpush.msra.mxu0 %v154
    %786 = vmatpush.msra.mxu0 %v150
    %787 = vmatpush.msra.mxu0 %v146
    %788 = vmatpush.msra.mxu0 %v142
    %789 = vmatpush.msra.mxu0 %v138
    %790 = vmatpush.msra.mxu0 %v134
    %791 = vmatpush.msra.mxu0 %v130
    %792 = vmatpush.msra.mxu0 %v126
    %793 = vmatpush.msra.mxu0 %v122
    %794 = vmatpush.msra.mxu0 %v118
    %795 = vmatpush.msra.mxu0 %v114
    %796 = vmatpush.msra.mxu0 %v110
    %797 = vmatpush.msra.mxu0 %v106
    %798 = vmatpush.msra.mxu0 %v102
    %799 = vmatmul.f32.gmra.mxu0 %v93
    %v800 = vpop.f32.mrf.mxu0
    %v801 = vadd.f32 %v616, %v800
    %802 = vdwg.mxu0
    %803 = vmatpush.msra.mxu0 %v226
    %804 = vmatpush.msra.mxu0 %v222
    %805 = vmatpush.msra.mxu0 %v218
    %806 = vmatpush.msra.mxu0 %v214
    %807 = vmatpush.msra.mxu0 %v210
    %808 = vmatpush.msra.mxu0 %v206
    %809 = vmatpush.msra.mxu0 %v202
    %810 = vmatpush.msra.mxu0 %v198
    %811 = vmatpush.msra.mxu0 %v194
    %812 = vmatpush.msra.mxu0 %v190
    %813 = vmatpush.msra.mxu0 %v186
    %814 = vmatpush.msra.mxu0 %v182
    %815 = vmatpush.msra.mxu0 %v178
    %816 = vmatpush.msra.mxu0 %v174
    %817 = vmatpush.msra.mxu0 %v170
    %818 = vmatpush.msra.mxu0 %v166
    %819 = vmatmul.f32.gmra.mxu0 %v94
    %v820 = vpop.f32.mrf.mxu0
    %v821 = vadd.f32 %v801, %v820
    %822 = vdwg.mxu0
    %823 = vmatpush.msra.mxu0 %v290
    %824 = vmatpush.msra.mxu0 %v286
    %825 = vmatpush.msra.mxu0 %v282
    %826 = vmatpush.msra.mxu0 %v278
    %827 = vmatpush.msra.mxu0 %v274
    %828 = vmatpush.msra.mxu0 %v270
    %829 = vmatpush.msra.mxu0 %v266
    %830 = vmatpush.msra.mxu0 %v262
    %831 = vmatpush.msra.mxu0 %v258
    %832 = vmatpush.msra.mxu0 %v254
    %833 = vmatpush.msra.mxu0 %v250
    %834 = vmatpush.msra.mxu0 %v246
    %835 = vmatpush.msra.mxu0 %v242
    %836 = vmatpush.msra.mxu0 %v238
    %837 = vmatpush.msra.mxu0 %v234
    %838 = vmatpush.msra.mxu0 %v230
    %839 = vmatmul.f32.gmra.mxu0 %v95
    %v840 = vpop.f32.mrf.mxu0
    %v841 = vadd.f32 %v821, %v840
    %842 = vdwg.mxu0
    %843 = vmatpush.msra.mxu0 %v354
    %844 = vmatpush.msra.mxu0 %v350
    %845 = vmatpush.msra.mxu0 %v346
    %846 = vmatpush.msra.mxu0 %v342
    %847 = vmatpush.msra.mxu0 %v338
    %848 = vmatpush.msra.mxu0 %v334
    %849 = vmatpush.msra.mxu0 %v330
    %850 = vmatpush.msra.mxu0 %v326
    %851 = vmatpush.msra.mxu0 %v322
    %852 = vmatpush.msra.mxu0 %v318
    %853 = vmatpush.msra.mxu0 %v314
    %854 = vmatpush.msra.mxu0 %v310
    %855 = vmatpush.msra.mxu0 %v306
    %856 = vmatpush.msra.mxu0 %v302
    %857 = vmatpush.msra.mxu0 %v298
    %858 = vmatpush.msra.mxu0 %v294
    %859 = vmatmul.f32.gmra.mxu0 %v96
    %v860 = vpop.f32.mrf.mxu0
    %v861 = vadd.f32 %v841, %v860
    %862 = vdwg.mxu0
    %863 = vmatpush.msra.mxu0 %v418
    %864 = vmatpush.msra.mxu0 %v414
    %865 = vmatpush.msra.mxu0 %v410
    %866 = vmatpush.msra.mxu0 %v406
    %867 = vmatpush.msra.mxu0 %v402
    %868 = vmatpush.msra.mxu0 %v398
    %869 = vmatpush.msra.mxu0 %v394
    %870 = vmatpush.msra.mxu0 %v390
    %871 = vmatpush.msra.mxu0 %v386
    %872 = vmatpush.msra.mxu0 %v382
    %873 = vmatpush.msra.mxu0 %v378
    %874 = vmatpush.msra.mxu0 %v374
    %875 = vmatpush.msra.mxu0 %v370
    %876 = vmatpush.msra.mxu0 %v366
    %877 = vmatpush.msra.mxu0 %v362
    %878 = vmatpush.msra.mxu0 %v358
    %879 = vmatmul.f32.gmra.mxu0 %v97
    %v880 = vpop.f32.mrf.mxu0
    %v881 = vadd.f32 %v861, %v880
    %882 = vdwg.mxu0
    %883 = vmatpush.msra.mxu0 %v482
    %884 = vmatpush.msra.mxu0 %v478
    %885 = vmatpush.msra.mxu0 %v474
    %886 = vmatpush.msra.mxu0 %v470
    %887 = vmatpush.msra.mxu0 %v466
    %888 = vmatpush.msra.mxu0 %v462
    %889 = vmatpush.msra.mxu0 %v458
    %890 = vmatpush.msra.mxu0 %v454
    %891 = vmatpush.msra.mxu0 %v450
    %892 = vmatpush.msra.mxu0 %v446
    %893 = vmatpush.msra.mxu0 %v442
    %894 = vmatpush.msra.mxu0 %v438
    %895 = vmatpush.msra.mxu0 %v434
    %896 = vmatpush.msra.mxu0 %v430
    %897 = vmatpush.msra.mxu0 %v426
    %898 = vmatpush.msra.mxu0 %v422
    %899 = vmatmul.f32.gmra.mxu0 %v98
    %v900 = vpop.f32.mrf.mxu0
    %v901 = vadd.f32 %v881, %v900
    %902 = vdwg.mxu0
    %903 = vmatpush.msra.mxu0 %v546
    %904 = vmatpush.msra.mxu0 %v542
    %905 = vmatpush.msra.mxu0 %v538
    %906 = vmatpush.msra.mxu0 %v534
    %907 = vmatpush.msra.mxu0 %v530
    %908 = vmatpush.msra.mxu0 %v526
    %909 = vmatpush.msra.mxu0 %v522
    %910 = vmatpush.msra.mxu0 %v518
    %911 = vmatpush.msra.mxu0 %v514
    %912 = vmatpush.msra.mxu0 %v510
    %913 = vmatpush.msra.mxu0 %v506
    %914 = vmatpush.msra.mxu0 %v502
    %915 = vmatpush.msra.mxu0 %v498
    %916 = vmatpush.msra.mxu0 %v494
    %917 = vmatpush.msra.mxu0 %v490
    %918 = vmatpush.msra.mxu0 %v486
    %919 = vmatmul.f32.gmra.mxu0 %v99
    %v920 = vpop.f32.mrf.mxu0
    %v921 = vadd.f32 %v901, %v920
    %922 = vdwg.mxu0
    %923 = vmatpush.msra.mxu0 %v610
    %924 = vmatpush.msra.mxu0 %v606
    %925 = vmatpush.msra.mxu0 %v602
    %926 = vmatpush.msra.mxu0 %v598
    %927 = vmatpush.msra.mxu0 %v594
    %928 = vmatpush.msra.mxu0 %v590
    %929 = vmatpush.msra.mxu0 %v586
    %930 = vmatpush.msra.mxu0 %v582
    %931 = vmatpush.msra.mxu0 %v578
    %932 = vmatpush.msra.mxu0 %v574
    %933 = vmatpush.msra.mxu0 %v570
    %934 = vmatpush.msra.mxu0 %v566
    %935 = vmatpush.msra.mxu0 %v562
    %936 = vmatpush.msra.mxu0 %v558
    %937 = vmatpush.msra.mxu0 %v554
    %938 = vmatpush.msra.mxu0 %v550
    %939 = vmatmul.f32.gmra.mxu0 %v100
    %v940 = vpop.f32.mrf.mxu0
    %v941 = vadd.f32 %v921, %v940
    %942 = vdwg.mxu0
    %943 = vmatpush.msra.mxu0 %v163
    %944 = vmatpush.msra.mxu0 %v159
    %945 = vmatpush.msra.mxu0 %v155
    %946 = vmatpush.msra.mxu0 %v151
    %947 = vmatpush.msra.mxu0 %v147
    %948 = vmatpush.msra.mxu0 %v143
    %949 = vmatpush.msra.mxu0 %v139
    %950 = vmatpush.msra.mxu0 %v135
    %951 = vmatpush.msra.mxu0 %v131
    %952 = vmatpush.msra.mxu0 %v127
    %953 = vmatpush.msra.mxu0 %v123
    %954 = vmatpush.msra.mxu0 %v119
    %955 = vmatpush.msra.mxu0 %v115
    %956 = vmatpush.msra.mxu0 %v111
    %957 = vmatpush.msra.mxu0 %v107
    %958 = vmatpush.msra.mxu0 %v103
    %959 = vmatmul.f32.gmra.mxu0 %v93
    %v960 = vpop.f32.mrf.mxu0
    %v961 = vadd.f32 %v617, %v960
    %962 = vdwg.mxu0
    %963 = vmatpush.msra.mxu0 %v227
    %964 = vmatpush.msra.mxu0 %v223
    %965 = vmatpush.msra.mxu0 %v219
    %966 = vmatpush.msra.mxu0 %v215
    %967 = vmatpush.msra.mxu0 %v211
    %968 = vmatpush.msra.mxu0 %v207
    %969 = vmatpush.msra.mxu0 %v203
    %970 = vmatpush.msra.mxu0 %v199
    %971 = vmatpush.msra.mxu0 %v195
    %972 = vmatpush.msra.mxu0 %v191
    %973 = vmatpush.msra.mxu0 %v187
    %974 = vmatpush.msra.mxu0 %v183
    %975 = vmatpush.msra.mxu0 %v179
    %976 = vmatpush.msra.mxu0 %v175
    %977 = vmatpush.msra.mxu0 %v171
    %978 = vmatpush.msra.mxu0 %v167
    %979 = vmatmul.f32.gmra.mxu0 %v94
    %v980 = vpop.f32.mrf.mxu0
    %v981 = vadd.f32 %v961, %v980
    %982 = vdwg.mxu0
    %983 = vmatpush.msra.mxu0 %v291
    %984 = vmatpush.msra.mxu0 %v287
    %985 = vmatpush.msra.mxu0 %v283
    %986 = vmatpush.msra.mxu0 %v279
    %987 = vmatpush.msra.mxu0 %v275
    %988 = vmatpush.msra.mxu0 %v271
    %989 = vmatpush.msra.mxu0 %v267
    %990 = vmatpush.msra.mxu0 %v263
    %991 = vmatpush.msra.mxu0 %v259
    %992 = vmatpush.msra.mxu0 %v255
    %993 = vmatpush.msra.mxu0 %v251
    %994 = vmatpush.msra.mxu0 %v247
    %995 = vmatpush.msra.mxu0 %v243
    %996 = vmatpush.msra.mxu0 %v239
    %997 = vmatpush.msra.mxu0 %v235
    %998 = vmatpush.msra.mxu0 %v231
    %999 = vmatmul.f32.gmra.mxu0 %v95
    %v1000 = vpop.f32.mrf.mxu0
    %v1001 = vadd.f32 %v981, %v1000
    %1002 = vdwg.mxu0
    %1003 = vmatpush.msra.mxu0 %v355
    %1004 = vmatpush.msra.mxu0 %v351
    %1005 = vmatpush.msra.mxu0 %v347
    %1006 = vmatpush.msra.mxu0 %v343
    %1007 = vmatpush.msra.mxu0 %v339
    %1008 = vmatpush.msra.mxu0 %v335
    %1009 = vmatpush.msra.mxu0 %v331
    %1010 = vmatpush.msra.mxu0 %v327
    %1011 = vmatpush.msra.mxu0 %v323
    %1012 = vmatpush.msra.mxu0 %v319
    %1013 = vmatpush.msra.mxu0 %v315
    %1014 = vmatpush.msra.mxu0 %v311
    %1015 = vmatpush.msra.mxu0 %v307
    %1016 = vmatpush.msra.mxu0 %v303
    %1017 = vmatpush.msra.mxu0 %v299
    %1018 = vmatpush.msra.mxu0 %v295
    %1019 = vmatmul.f32.gmra.mxu0 %v96
    %v1020 = vpop.f32.mrf.mxu0
    %v1021 = vadd.f32 %v1001, %v1020
    %1022 = vdwg.mxu0
    %1023 = vmatpush.msra.mxu0 %v419
    %1024 = vmatpush.msra.mxu0 %v415
    %1025 = vmatpush.msra.mxu0 %v411
    %1026 = vmatpush.msra.mxu0 %v407
    %1027 = vmatpush.msra.mxu0 %v403
    %1028 = vmatpush.msra.mxu0 %v399
    %1029 = vmatpush.msra.mxu0 %v395
    %1030 = vmatpush.msra.mxu0 %v391
    %1031 = vmatpush.msra.mxu0 %v387
    %1032 = vmatpush.msra.mxu0 %v383
    %1033 = vmatpush.msra.mxu0 %v379
    %1034 = vmatpush.msra.mxu0 %v375
    %1035 = vmatpush.msra.mxu0 %v371
    %1036 = vmatpush.msra.mxu0 %v367
    %1037 = vmatpush.msra.mxu0 %v363
    %1038 = vmatpush.msra.mxu0 %v359
    %1039 = vmatmul.f32.gmra.mxu0 %v97
    %v1040 = vpop.f32.mrf.mxu0
    %v1041 = vadd.f32 %v1021, %v1040
    %1042 = vdwg.mxu0
    %1043 = vmatpush.msra.mxu0 %v483
    %1044 = vmatpush.msra.mxu0 %v479
    %1045 = vmatpush.msra.mxu0 %v475
    %1046 = vmatpush.msra.mxu0 %v471
    %1047 = vmatpush.msra.mxu0 %v467
    %1048 = vmatpush.msra.mxu0 %v463
    %1049 = vmatpush.msra.mxu0 %v459
    %1050 = vmatpush.msra.mxu0 %v455
    %1051 = vmatpush.msra.mxu0 %v451
    %1052 = vmatpush.msra.mxu0 %v447
    %1053 = vmatpush.msra.mxu0 %v443
    %1054 = vmatpush.msra.mxu0 %v439
    %1055 = vmatpush.msra.mxu0 %v435
    %1056 = vmatpush.msra.mxu0 %v431
    %1057 = vmatpush.msra.mxu0 %v427
    %1058 = vmatpush.msra.mxu0 %v423
    %1059 = vmatmul.f32.gmra.mxu0 %v98
    %v1060 = vpop.f32.mrf.mxu0
    %v1061 = vadd.f32 %v1041, %v1060
    %1062 = vdwg.mxu0
    %1063 = vmatpush.msra.mxu0 %v547
    %1064 = vmatpush.msra.mxu0 %v543
    %1065 = vmatpush.msra.mxu0 %v539
    %1066 = vmatpush.msra.mxu0 %v535
    %1067 = vmatpush.msra.mxu0 %v531
    %1068 = vmatpush.msra.mxu0 %v527
    %1069 = vmatpush.msra.mxu0 %v523
    %1070 = vmatpush.msra.mxu0 %v519
    %1071 = vmatpush.msra.mxu0 %v515
    %1072 = vmatpush.msra.mxu0 %v511
    %1073 = vmatpush.msra.mxu0 %v507
    %1074 = vmatpush.msra.mxu0 %v503
    %1075 = vmatpush.msra.mxu0 %v499
    %1076 = vmatpush.msra.mxu0 %v495
    %1077 = vmatpush.msra.mxu0 %v491
    %1078 = vmatpush.msra.mxu0 %v487
    %1079 = vmatmul.f32.gmra.mxu0 %v99
    %v1080 = vpop.f32.mrf.mxu0
    %v1081 = vadd.f32 %v1061, %v1080
    %1082 = vdwg.mxu0
    %1083 = vmatpush.msra.mxu0 %v611
    %1084 = vmatpush.msra.mxu0 %v607
    %1085 = vmatpush.msra.mxu0 %v603
    %1086 = vmatpush.msra.mxu0 %v599
    %1087 = vmatpush.msra.mxu0 %v595
    %1088 = vmatpush.msra.mxu0 %v591
    %1089 = vmatpush.msra.mxu0 %v587
    %1090 = vmatpush.msra.mxu0 %v583
    %1091 = vmatpush.msra.mxu0 %v579
    %1092 = vmatpush.msra.mxu0 %v575
    %1093 = vmatpush.msra.mxu0 %v571
    %1094 = vmatpush.msra.mxu0 %v567
    %1095 = vmatpush.msra.mxu0 %v563
    %1096 = vmatpush.msra.mxu0 %v559
    %1097 = vmatpush.msra.mxu0 %v555
    %1098 = vmatpush.msra.mxu0 %v551
    %1099 = vmatmul.f32.gmra.mxu0 %v100
    %v1100 = vpop.f32.mrf.mxu0
    %v1101 = vadd.f32 %v1081, %v1100
    %1102 = vdwg.mxu0
    %1103 = vmatpush.msra.mxu0 %v164
    %1104 = vmatpush.msra.mxu0 %v160
    %1105 = vmatpush.msra.mxu0 %v156
    %1106 = vmatpush.msra.mxu0 %v152
    %1107 = vmatpush.msra.mxu0 %v148
    %1108 = vmatpush.msra.mxu0 %v144
    %1109 = vmatpush.msra.mxu0 %v140
    %1110 = vmatpush.msra.mxu0 %v136
    %1111 = vmatpush.msra.mxu0 %v132
    %1112 = vmatpush.msra.mxu0 %v128
    %1113 = vmatpush.msra.mxu0 %v124
    %1114 = vmatpush.msra.mxu0 %v120
    %1115 = vmatpush.msra.mxu0 %v116
    %1116 = vmatpush.msra.mxu0 %v112
    %1117 = vmatpush.msra.mxu0 %v108
    %1118 = vmatpush.msra.mxu0 %v104
    %1119 = vmatmul.f32.gmra.mxu0 %v93
    %v1120 = vpop.f32.mrf.mxu0
    %v1121 = vadd.f32 %v618, %v1120
    %1122 = vdwg.mxu0
    %1123 = vmatpush.msra.mxu0 %v228
    %1124 = vmatpush.msra.mxu0 %v224
    %1125 = vmatpush.msra.mxu0 %v220
    %1126 = vmatpush.msra.mxu0 %v216
    %1127 = vmatpush.msra.mxu0 %v212
    %1128 = vmatpush.msra.mxu0 %v208
    %1129 = vmatpush.msra.mxu0 %v204
    %1130 = vmatpush.msra.mxu0 %v200
    %1131 = vmatpush.msra.mxu0 %v196
    %1132 = vmatpush.msra.mxu0 %v192
    %1133 = vmatpush.msra.mxu0 %v188
    %1134 = vmatpush.msra.mxu0 %v184
    %1135 = vmatpush.msra.mxu0 %v180
    %1136 = vmatpush.msra.mxu0 %v176
    %1137 = vmatpush.msra.mxu0 %v172
    %1138 = vmatpush.msra.mxu0 %v168
    %1139 = vmatmul.f32.gmra.mxu0 %v94
    %v1140 = vpop.f32.mrf.mxu0
    %v1141 = vadd.f32 %v1121, %v1140
    %1142 = vdwg.mxu0
    %1143 = vmatpush.msra.mxu0 %v292
    %1144 = vmatpush.msra.mxu0 %v288
    %1145 = vmatpush.msra.mxu0 %v284
    %1146 = vmatpush.msra.mxu0 %v280
    %1147 = vmatpush.msra.mxu0 %v276
    %1148 = vmatpush.msra.mxu0 %v272
    %1149 = vmatpush.msra.mxu0 %v268
    %1150 = vmatpush.msra.mxu0 %v264
    %1151 = vmatpush.msra.mxu0 %v260
    %1152 = vmatpush.msra.mxu0 %v256
    %1153 = vmatpush.msra.mxu0 %v252
    %1154 = vmatpush.msra.mxu0 %v248
    %1155 = vmatpush.msra.mxu0 %v244
    %1156 = vmatpush.msra.mxu0 %v240
    %1157 = vmatpush.msra.mxu0 %v236
    %1158 = vmatpush.msra.mxu0 %v232
    %1159 = vmatmul.f32.gmra.mxu0 %v95
    %v1160 = vpop.f32.mrf.mxu0
    %v1161 = vadd.f32 %v1141, %v1160
    %1162 = vdwg.mxu0
    %1163 = vmatpush.msra.mxu0 %v356
    %1164 = vmatpush.msra.mxu0 %v352
    %1165 = vmatpush.msra.mxu0 %v348
    %1166 = vmatpush.msra.mxu0 %v344
    %1167 = vmatpush.msra.mxu0 %v340
    %1168 = vmatpush.msra.mxu0 %v336
    %1169 = vmatpush.msra.mxu0 %v332
    %1170 = vmatpush.msra.mxu0 %v328
    %1171 = vmatpush.msra.mxu0 %v324
    %1172 = vmatpush.msra.mxu0 %v320
    %1173 = vmatpush.msra.mxu0 %v316
    %1174 = vmatpush.msra.mxu0 %v312
    %1175 = vmatpush.msra.mxu0 %v308
    %1176 = vmatpush.msra.mxu0 %v304
    %1177 = vmatpush.msra.mxu0 %v300
    %1178 = vmatpush.msra.mxu0 %v296
    %1179 = vmatmul.f32.gmra.mxu0 %v96
    %v1180 = vpop.f32.mrf.mxu0
    %v1181 = vadd.f32 %v1161, %v1180
    %1182 = vdwg.mxu0
    %1183 = vmatpush.msra.mxu0 %v420
    %1184 = vmatpush.msra.mxu0 %v416
    %1185 = vmatpush.msra.mxu0 %v412
    %1186 = vmatpush.msra.mxu0 %v408
    %1187 = vmatpush.msra.mxu0 %v404
    %1188 = vmatpush.msra.mxu0 %v400
    %1189 = vmatpush.msra.mxu0 %v396
    %1190 = vmatpush.msra.mxu0 %v392
    %1191 = vmatpush.msra.mxu0 %v388
    %1192 = vmatpush.msra.mxu0 %v384
    %1193 = vmatpush.msra.mxu0 %v380
    %1194 = vmatpush.msra.mxu0 %v376
    %1195 = vmatpush.msra.mxu0 %v372
    %1196 = vmatpush.msra.mxu0 %v368
    %1197 = vmatpush.msra.mxu0 %v364
    %1198 = vmatpush.msra.mxu0 %v360
    %1199 = vmatmul.f32.gmra.mxu0 %v97
    %v1200 = vpop.f32.mrf.mxu0
    %v1201 = vadd.f32 %v1181, %v1200
    %1202 = vdwg.mxu0
    %1203 = vmatpush.msra.mxu0 %v484
    %1204 = vmatpush.msra.mxu0 %v480
    %1205 = vmatpush.msra.mxu0 %v476
    %1206 = vmatpush.msra.mxu0 %v472
    %1207 = vmatpush.msra.mxu0 %v468
    %1208 = vmatpush.msra.mxu0 %v464
    %1209 = vmatpush.msra.mxu0 %v460
    %1210 = vmatpush.msra.mxu0 %v456
    %1211 = vmatpush.msra.mxu0 %v452
    %1212 = vmatpush.msra.mxu0 %v448
    %1213 = vmatpush.msra.mxu0 %v444
    %1214 = vmatpush.msra.mxu0 %v440
    %1215 = vmatpush.msra.mxu0 %v436
    %1216 = vmatpush.msra.mxu0 %v432
    %1217 = vmatpush.msra.mxu0 %v428
    %1218 = vmatpush.msra.mxu0 %v424
    %1219 = vmatmul.f32.gmra.mxu0 %v98
    %v1220 = vpop.f32.mrf.mxu0
    %v1221 = vadd.f32 %v1201, %v1220
    %1222 = vdwg.mxu0
    %1223 = vmatpush.msra.mxu0 %v548
    %1224 = vmatpush.msra.mxu0 %v544
    %1225 = vmatpush.msra.mxu0 %v540
    %1226 = vmatpush.msra.mxu0 %v536
    %1227 = vmatpush.msra.mxu0 %v532
    %1228 = vmatpush.msra.mxu0 %v528
    %1229 = vmatpush.msra.mxu0 %v524
    %1230 = vmatpush.msra.mxu0 %v520
    %1231 = vmatpush.msra.mxu0 %v516
    %1232 = vmatpush.msra.mxu0 %v512
    %1233 = vmatpush.msra.mxu0 %v508
    %1234 = vmatpush.msra.mxu0 %v504
    %1235 = vmatpush.msra.mxu0 %v500
    %1236 = vmatpush.msra.mxu0 %v496
    %1237 = vmatpush.msra.mxu0 %v492
    %1238 = vmatpush.msra.mxu0 %v488
    %1239 = vmatmul.f32.gmra.mxu0 %v99
    %v1240 = vpop.f32.mrf.mxu0
    %v1241 = vadd.f32 %v1221, %v1240
    %1242 = vdwg.mxu0
    %1243 = vmatpush.msra.mxu0 %v612
    %1244 = vmatpush.msra.mxu0 %v608
    %1245 = vmatpush.msra.mxu0 %v604
    %1246 = vmatpush.msra.mxu0 %v600
    %1247 = vmatpush.msra.mxu0 %v596
    %1248 = vmatpush.msra.mxu0 %v592
    %1249 = vmatpush.msra.mxu0 %v588
    %1250 = vmatpush.msra.mxu0 %v584
    %1251 = vmatpush.msra.mxu0 %v580
    %1252 = vmatpush.msra.mxu0 %v576
    %1253 = vmatpush.msra.mxu0 %v572
    %1254 = vmatpush.msra.mxu0 %v568
    %1255 = vmatpush.msra.mxu0 %v564
    %1256 = vmatpush.msra.mxu0 %v560
    %1257 = vmatpush.msra.mxu0 %v556
    %1258 = vmatpush.msra.mxu0 %v552
    %1259 = vmatmul.f32.gmra.mxu0 %v100
    %v1260 = vpop.f32.mrf.mxu0
    %v1261 = vadd.f32 %v1241, %v1260
    %1262 = vdwg.mxu0
    %v1263 = vld [vmem:[#allocation8] sm:$0xff]
    %v1264 = vld [vmem:[#allocation8 + $0x8] sm:$0xff]
    %v1265 = vld [vmem:[#allocation8 + $0x10] sm:$0xff]
    %v1266 = vld [vmem:[#allocation8 + $0x18] sm:$0xff]
    %v1267 = vld [vmem:[#allocation8 + $0x20] sm:$0xff]
    %v1268 = vld [vmem:[#allocation8 + $0x28] sm:$0xff]
    %v1269 = vld [vmem:[#allocation8 + $0x30] sm:$0xff]
    %v1270 = vld [vmem:[#allocation8 + $0x38] sm:$0xff]
    %v1271 = vld [vmem:[#allocation8 + $0x40] sm:$0xff]
    %v1272 = vld [vmem:[#allocation8 + $0x48] sm:$0xff]
    %v1273 = vld [vmem:[#allocation8 + $0x50] sm:$0xff]
    %v1274 = vld [vmem:[#allocation8 + $0x58] sm:$0xff]
    %v1275 = vld [vmem:[#allocation8 + $0x60] sm:$0xff]
    %v1276 = vld [vmem:[#allocation8 + $0x68] sm:$0xff]
    %v1277 = vld [vmem:[#allocation8 + $0x70] sm:$0xff]
    %v1278 = vld [vmem:[#allocation8 + $0x78] sm:$0xff]
    %v1279 = vld [vmem:[#allocation8 + $0x80] sm:$0xff]
    %v1280 = vld [vmem:[#allocation8 + $0x88] sm:$0xff]
    %v1281 = vld [vmem:[#allocation8 + $0x90] sm:$0xff]
    %v1282 = vld [vmem:[#allocation8 + $0x98] sm:$0xff]
    %v1283 = vld [vmem:[#allocation8 + $0xa0] sm:$0xff]
    %v1284 = vld [vmem:[#allocation8 + $0xa8] sm:$0xff]
    %v1285 = vld [vmem:[#allocation8 + $0xb0] sm:$0xff]
    %v1286 = vld [vmem:[#allocation8 + $0xb8] sm:$0xff]
    %v1287 = vld [vmem:[#allocation8 + $0xc0] sm:$0xff]
    %v1288 = vld [vmem:[#allocation8 + $0xc8] sm:$0xff]
    %v1289 = vld [vmem:[#allocation8 + $0xd0] sm:$0xff]
    %v1290 = vld [vmem:[#allocation8 + $0xd8] sm:$0xff]
    %v1291 = vld [vmem:[#allocation8 + $0xe0] sm:$0xff]
    %v1292 = vld [vmem:[#allocation8 + $0xe8] sm:$0xff]
    %v1293 = vld [vmem:[#allocation8 + $0xf0] sm:$0xff]
    %v1294 = vld [vmem:[#allocation8 + $0xf8] sm:$0xff]
    %v1295 = vld [vmem:[#allocation8 + $0x100] sm:$0xff]
    %v1296 = vld [vmem:[#allocation8 + $0x108] sm:$0xff]
    %v1297 = vld [vmem:[#allocation8 + $0x110] sm:$0xff]
    %v1298 = vld [vmem:[#allocation8 + $0x118] sm:$0xff]
    %v1299 = vld [vmem:[#allocation8 + $0x120] sm:$0xff]
    %v1300 = vld [vmem:[#allocation8 + $0x128] sm:$0xff]
    %v1301 = vld [vmem:[#allocation8 + $0x130] sm:$0xff]
    %v1302 = vld [vmem:[#allocation8 + $0x138] sm:$0xff]
    %v1303 = vld [vmem:[#allocation8 + $0x140] sm:$0xff]
    %v1304 = vld [vmem:[#allocation8 + $0x148] sm:$0xff]
    %v1305 = vld [vmem:[#allocation8 + $0x150] sm:$0xff]
    %v1306 = vld [vmem:[#allocation8 + $0x158] sm:$0xff]
    %v1307 = vld [vmem:[#allocation8 + $0x160] sm:$0xff]
    %v1308 = vld [vmem:[#allocation8 + $0x168] sm:$0xff]
    %v1309 = vld [vmem:[#allocation8 + $0x170] sm:$0xff]
    %v1310 = vld [vmem:[#allocation8 + $0x178] sm:$0xff]
    %v1311 = vld [vmem:[#allocation8 + $0x180] sm:$0xff]
    %v1312 = vld [vmem:[#allocation8 + $0x188] sm:$0xff]
    %v1313 = vld [vmem:[#allocation8 + $0x190] sm:$0xff]
    %v1314 = vld [vmem:[#allocation8 + $0x198] sm:$0xff]
    %v1315 = vld [vmem:[#allocation8 + $0x1a0] sm:$0xff]
    %v1316 = vld [vmem:[#allocation8 + $0x1a8] sm:$0xff]
    %v1317 = vld [vmem:[#allocation8 + $0x1b0] sm:$0xff]
    %v1318 = vld [vmem:[#allocation8 + $0x1b8] sm:$0xff]
    %v1319 = vld [vmem:[#allocation8 + $0x1c0] sm:$0xff]
    %v1320 = vld [vmem:[#allocation8 + $0x1c8] sm:$0xff]
    %v1321 = vld [vmem:[#allocation8 + $0x1d0] sm:$0xff]
    %v1322 = vld [vmem:[#allocation8 + $0x1d8] sm:$0xff]
    %v1323 = vld [vmem:[#allocation8 + $0x1e0] sm:$0xff]
    %v1324 = vld [vmem:[#allocation8 + $0x1e8] sm:$0xff]
    %v1325 = vld [vmem:[#allocation8 + $0x1f0] sm:$0xff]
    %v1326 = vld [vmem:[#allocation8 + $0x1f8] sm:$0xff]
    %v1327 = vld [vmem:[#allocation10] sm:$0x1]
    %v1329 = vperm.slane %v1327, 0
    %1331 = vmatpush.msra.mxu0 %v1278
    %1332 = vmatpush.msra.mxu0 %v1277
    %1333 = vmatpush.msra.mxu0 %v1276
    %1334 = vmatpush.msra.mxu0 %v1275
    %1335 = vmatpush.msra.mxu0 %v1274
    %1336 = vmatpush.msra.mxu0 %v1273
    %1337 = vmatpush.msra.mxu0 %v1272
    %1338 = vmatpush.msra.mxu0 %v1271
    %1339 = vmatpush.msra.mxu0 %v1270
    %1340 = vmatpush.msra.mxu0 %v1269
    %1341 = vmatpush.msra.mxu0 %v1268
    %1342 = vmatpush.msra.mxu0 %v1267
    %1343 = vmatpush.msra.mxu0 %v1266
    %1344 = vmatpush.msra.mxu0 %v1265
    %1345 = vmatpush.msra.mxu0 %v1264
    %1346 = vmatpush.msra.mxu0 %v1263
    %1347 = vmatmul.f32.gmra.mxu0 %v781
    %v1348 = vpop.f32.mrf.mxu0
    %v1349 = vadd.f32 %v1329, %v1348
    %1350 = vdwg.mxu0
    %1351 = vmatpush.msra.mxu0 %v1294
    %1352 = vmatpush.msra.mxu0 %v1293
    %1353 = vmatpush.msra.mxu0 %v1292
    %1354 = vmatpush.msra.mxu0 %v1291
    %1355 = vmatpush.msra.mxu0 %v1290
    %1356 = vmatpush.msra.mxu0 %v1289
    %1357 = vmatpush.msra.mxu0 %v1288
    %1358 = vmatpush.msra.mxu0 %v1287
    %1359 = vmatpush.msra.mxu0 %v1286
    %1360 = vmatpush.msra.mxu0 %v1285
    %1361 = vmatpush.msra.mxu0 %v1284
    %1362 = vmatpush.msra.mxu0 %v1283
    %1363 = vmatpush.msra.mxu0 %v1282
    %1364 = vmatpush.msra.mxu0 %v1281
    %1365 = vmatpush.msra.mxu0 %v1280
    %1366 = vmatpush.msra.mxu0 %v1279
    %1367 = vmatmul.f32.gmra.mxu0 %v941
    %v1368 = vpop.f32.mrf.mxu0
    %v1369 = vadd.f32 %v1349, %v1368
    %1370 = vdwg.mxu0
    %1371 = vmatpush.msra.mxu0 %v1310
    %1372 = vmatpush.msra.mxu0 %v1309
    %1373 = vmatpush.msra.mxu0 %v1308
    %1374 = vmatpush.msra.mxu0 %v1307
    %1375 = vmatpush.msra.mxu0 %v1306
    %1376 = vmatpush.msra.mxu0 %v1305
    %1377 = vmatpush.msra.mxu0 %v1304
    %1378 = vmatpush.msra.mxu0 %v1303
    %1379 = vmatpush.msra.mxu0 %v1302
    %1380 = vmatpush.msra.mxu0 %v1301
    %1381 = vmatpush.msra.mxu0 %v1300
    %1382 = vmatpush.msra.mxu0 %v1299
    %1383 = vmatpush.msra.mxu0 %v1298
    %1384 = vmatpush.msra.mxu0 %v1297
    %1385 = vmatpush.msra.mxu0 %v1296
    %1386 = vmatpush.msra.mxu0 %v1295
    %1387 = vmatmul.f32.gmra.mxu0 %v1101
    %v1388 = vpop.f32.mrf.mxu0
    %v1389 = vadd.f32 %v1369, %v1388
    %1390 = vdwg.mxu0
    %1391 = vmatpush.msra.mxu0 %v1326
    %1392 = vmatpush.msra.mxu0 %v1325
    %1393 = vmatpush.msra.mxu0 %v1324
    %1394 = vmatpush.msra.mxu0 %v1323
    %1395 = vmatpush.msra.mxu0 %v1322
    %1396 = vmatpush.msra.mxu0 %v1321
    %1397 = vmatpush.msra.mxu0 %v1320
    %1398 = vmatpush.msra.mxu0 %v1319
    %1399 = vmatpush.msra.mxu0 %v1318
    %1400 = vmatpush.msra.mxu0 %v1317
    %1401 = vmatpush.msra.mxu0 %v1316
    %1402 = vmatpush.msra.mxu0 %v1315
    %1403 = vmatpush.msra.mxu0 %v1314
    %1404 = vmatpush.msra.mxu0 %v1313
    %1405 = vmatpush.msra.mxu0 %v1312
    %1406 = vmatpush.msra.mxu0 %v1311
    %1407 = vmatmul.f32.gmra.mxu0 %v1261
    %v1408 = vpop.f32.mrf.mxu0
    %v1409 = vadd.f32 %v1389, %v1408
    %1410 = vdwg.mxu0
    %1411 = vmax.xlane.f32.xlu0 %v1409
    %v1412 = vpop.xlane.xlu0 %1411
    %v1413 = vsub.f32 %v1409, %v1412
    %v1414 = vmul.f32 %v1413, 1.442695
    %v1415 = vpow.pop %v1414
    %1416 = vadd.xlane.f32.xlu0 %v1415
    %v1417 = vpop.xlane.xlu0 %1416
    %v1418 = vrcp.pop %v1417
    %v1419 = vmul.f32 %v1417, %v1418
    %v1420 = vsub.f32 2.0, %v1419
    %v1421 = vmul.f32 %v1418, %v1420
    %v1422 = vmul.f32 %v1415, %v1421
    %1423 = vst [vmem:[#allocation11] sm:$0xff] %v1422
    // Predicated region
    $region42: #{tpu_custom_call.1} parent=1 // pred_check
      _
    $region43: #{tpu_custom_call.1} parent=1 // pred_check_branch
      %1425 = sbr.rel (0) target = $region45
    $region44: #{tpu_custom_call.1} parent=1 // pred_region
      %1427 = vsyncadd [#allocation4], 0
      %s1429 = sshll.u32 [#allocation11], 4
      %s1430 = int_to_ptr.vmem [resolvable:$true] %s1429
      %s1431 = sshll.u32 %s5, 4
      %s1432 = int_to_ptr.hbm [resolvable:$true] %s1431
      %1434 = dma.vmem_to_hbm [thread:$0]  %s1430, 128, %s1432, [#allocation4]
    $region45: #{tpu_custom_call.1} parent=1 // pred_fallthru
      _
    // Predicated region
    $region46: #{tpu_custom_call.1} parent=1 // pred_check
      _
    $region47: #{tpu_custom_call.1} parent=1 // pred_check_branch
      %1436 = sbr.rel (0) target = $region49
    $region48: #{tpu_custom_call.1} parent=1 // pred_region
      %1438 = dma.done [#allocation4], 128
    $region49: #{tpu_custom_call.1} parent=1 // pred_fallthru
      _
    %1439 = vsyncpa [#allocation3], 1
    %1440 = vsyncpa [#allocation6], 1
    %1441 = vsyncpa [#allocation9], 1
    %1442 = vsyncpa [#allocation4], 1

</llo_original>
